<compile_context>
chip_gen: v7x
topology: tpu7x:2x2x1
jax: 0.10.0
libtpu: 0.0.40
codegen_flags: <defaults>
</compile_context>

<pallas_src>
import math

import jax
import jax.numpy as jnp
from jax.experimental import pallas as pl
from jax.experimental.pallas import tpu as pltpu


# ----------------------------- shape helpers -------------------------------

def _round_up(n, m):
    return ((n + m - 1) // m) * m


def _layer_dims(in_size):
    # Logical (unpadded) dims; weights stored pre-transposed as [fan_in, fan_out].
    return [(in_size, 250), (250, 125), (125, 64),
            (64, 125), (125, 250), (250, in_size)]


def _padded_layer_dims(in_size):
    # Pad every feature dim to the next multiple of 128 (lane-dense vregs).
    # NOTE: we deliberately do NOT pad further (e.g. 128 -> 256 to "fill" the
    # MXU); the kernel is memory-bound, bigger batch tiles are the right lever.
    in_p = _round_up(max(in_size, 128), 128)
    return [(in_p, 256), (256, 128), (128, 128),
            (128, 128), (128, 256), (256, in_p)], in_p


def pad_params(params, in_size, weight_dtype=jnp.bfloat16):
    """Zero-pad weights/biases to 128-multiple feature dims; cast weights.

    Padding is exact: padded weight rows/cols and biases are zero and
    ReLU(0)=0, so padded lanes stay exactly zero through the whole chain.
    """
    dims = _layer_dims(in_size)
    dims_p, in_p = _padded_layer_dims(in_size)
    padded = {}
    for idx, ((k, n), (kp, np_)) in enumerate(zip(dims, dims_p), start=1):
        w = params[f"w{idx}"]
        b = params[f"b{idx}"]
        padded[f"w{idx}"] = jnp.pad(w, ((0, kp - k), (0, np_ - n))).astype(weight_dtype)
        padded[f"b{idx}"] = jnp.pad(b, ((0, 0), (0, np_ - n))).astype(jnp.float32)
    return padded, dims_p, in_p


# --------------------------- TPU capability helpers -------------------------

def _vmem_capacity_bytes():
    """Per-core VMEM capacity; conservative 64 MiB (v7x per-TC) fallback."""
    try:
        info = pltpu.get_tpu_info()
        cap = int(getattr(info, "vmem_capacity_bytes"))
        if cap > 0:
            return cap
    except Exception:
        pass
    return 64 << 20


_BUFFERED_SUPPORT = None


def _buffered_single_supported():
    """One-time probe: can grid-invariant blocks be single-buffered via
    pipeline_mode=pl.Buffered(1)?  (Saves one resident-weight copy in VMEM.)"""
    global _BUFFERED_SUPPORT
    if _BUFFERED_SUPPORT is not None:
        return _BUFFERED_SUPPORT
    ok = False
    if hasattr(pl, "Buffered"):
        try:
            def _probe(x_ref, o_ref):
                o_ref[...] = x_ref[...] + 1.0

            out = pl.pallas_call(
                _probe,
                grid=(2,),
                in_specs=[pl.BlockSpec((8, 128), lambda i: (0, 0),
                                       pipeline_mode=pl.Buffered(1))],
                out_specs=pl.BlockSpec((8, 128), lambda i: (i, 0)),
                out_shape=jax.ShapeDtypeStruct((16, 128), jnp.float32),
            )(jnp.zeros((8, 128), jnp.float32))
            jax.block_until_ready(out)
            ok = True
        except Exception:
            ok = False
    _BUFFERED_SUPPORT = ok
    return ok


# -------------------------------- kernel -----------------------------------

def ae_kernel(x_ref,
              w1, b1, w2, b2, w3, b3,      # encoder params (VMEM-resident)
              w4, b4, w5, b5, w6, b6,      # decoder params (VMEM-resident)
              out_ref, bot_ref):
    """Full 6-layer MLP chain for one batch tile; every matmul on the MXU."""
    mxu_dt = w1.dtype  # bf16 by default (f32 if the caller disabled the cast)

    def lin(a, w_ref, b_ref):
        # MXU matmul in the weight dtype with f32 accumulation; bias in f32.
        return jnp.dot(a.astype(mxu_dt), w_ref[...],
                       preferred_element_type=jnp.float32) + b_ref[...]

    h = jnp.maximum(lin(x_ref[...], w1, b1), 0.0)        # Linear + ReLU
    h = lin(h, w2, b2)
    z = lin(h, w3, b3)                                   # bottleneck (pad lanes = 0)
    bot_ref[...] = z.astype(bot_ref.dtype)

    d = lin(z, w4, b4)
    d = jnp.maximum(lin(d, w5, b5), 0.0)                 # Linear + ReLU
    y = lin(d, w6, b6)
    out_ref[...] = y.astype(out_ref.dtype)


# ------------------------------- factory ------------------------------------

def make_num_ae_forward(params, in_size, *,
                        weight_dtype=jnp.bfloat16,
                        recon_dtype=jnp.bfloat16,
                        bottleneck_dtype=jnp.float32,
                        batch_tile=None,
                        min_kernel_batch=128,
                        return_padded=False,
                        single_buffer_weights=True):
    """Build a jitted forward(x) -> (reconstruction, bottleneck).

    Weight padding / casting is done ONCE here (hoisted out of the forward
    path).  The batch tile is derived from VMEM capacity (capped at 1024 rows
    unless batch_tile overrides) and never shrunk to force a grid >= 2.
    recon_dtype defaults to bf16 (HBM-traffic win; ~0.4% output rounding).
    """
    pparams, dims_p, in_p = pad_params(params, in_size, weight_dtype)
    flat = tuple(pparams[k] for i in range(1, 7) for k in (f"w{i}", f"b{i}"))
    weight_bytes = sum(int(a.size) * a.dtype.itemsize for a in flat)

    vmem_cap = _vmem_capacity_bytes()
    tile_cap = 1024 if batch_tile is None else max(128, (int(batch_tile) // 128) * 128)
    single_buffer = bool(single_buffer_weights) and _buffered_single_supported()

    x_itemsize = jnp.dtype(weight_dtype).itemsize
    recon_itemsize = jnp.dtype(recon_dtype).itemsize
    bot_itemsize = jnp.dtype(bottleneck_dtype).itemsize

    weight_buf_bytes = weight_bytes * (1 if single_buffer else 2)
    # Per-batch-row VMEM bytes per pipeline step: double-buffered x / outputs
    # plus an estimate of the in-kernel f32 activation slabs.
    per_row = (2 * in_p * x_itemsize
               + 2 * in_p * recon_itemsize
               + 2 * 128 * bot_itemsize
               + (2 * in_p + 5 * 256) * 4)

    def _pick_tile(batch):
        budget = int(vmem_cap * 0.6) - weight_buf_bytes
        rows = max(128, budget // max(per_row, 1))
        tile = min(tile_cap, _round_up(batch, 128), (rows // 128) * 128)
        return max(128, tile)

    def _resident_spec(a):
        # Same full block at every grid step -> stays resident in VMEM.
        idx_map = lambda i, _nd=a.ndim: (0,) * _nd
        if (single_buffer and a.ndim == 2
                and a.shape[0] % 8 == 0 and a.shape[1] % 128 == 0):
            # Grid-invariant weight matrices: single-buffered (no wasted copy).
            return pl.BlockSpec(a.shape, idx_map, pipeline_mode=pl.Buffered(1))
        return pl.BlockSpec(a.shape, idx_map)

    def _matched_forward(x, flat_p):
        # Fused-XLA path with the kernel's exact numerics (bf16 MXU inputs,
        # f32 accumulation, zero-padded feature dims).
        (w1, b1, w2, b2, w3, b3, w4, b4, w5, b5, w6, b6) = flat_p
        xp = x.astype(weight_dtype)
        if in_p != in_size:
            xp = jnp.pad(xp, ((0, 0), (0, in_p - in_size)))

        def lin(a, w, b):
            return jnp.dot(a.astype(w.dtype), w,
                           preferred_element_type=jnp.float32) + b

        h = jnp.maximum(lin(xp, w1, b1), 0.0)
        h = lin(h, w2, b2)
        z = lin(h, w3, b3)
        d = lin(z, w4, b4)
        d = jnp.maximum(lin(d, w5, b5), 0.0)
        y = lin(d, w6, b6)
        return y, z

    def _forward_impl(x, *flat_p):
        B = x.shape[0]

        # Tiny batches: launch + grid-step overhead dominates; identical
        # numerics, so the result does not depend on the dispatch path.
        if B < min_kernel_batch:
            y, z = _matched_forward(x, flat_p)
            return (y[:, :in_size].astype(recon_dtype),
                    z[:, :64].astype(bottleneck_dtype))

        tile = _pick_tile(B)
        B_pad = _round_up(B, tile)
        grid = (B_pad // tile,)

        # Lane-dense, zero-padded input slab (bf16 feed for the MXU).
        xp = x.astype(weight_dtype)
        if B_pad != B or in_p != in_size:
            xp = jnp.pad(xp, ((0, B_pad - B), (0, in_p - in_size)))

        out_shapes = (
            jax.ShapeDtypeStruct((B_pad, in_p), recon_dtype),    # reconstruction
            jax.ShapeDtypeStruct((B_pad, 128), bottleneck_dtype),  # bottleneck
        )

        flops = 2 * B_pad * sum(k * n for k, n in dims_p)
        bytes_accessed = (B_pad * in_p * x_itemsize
                          + B_pad * in_p * recon_itemsize
                          + B_pad * 128 * bot_itemsize
                          + weight_bytes)
        vmem_limit = int(min(vmem_cap * 0.9,
                             max(weight_buf_bytes + tile * per_row + (16 << 20),
                                 32 << 20)))

        recon_pad, bot_pad = pl.pallas_call(
            ae_kernel,
            grid=grid,
            in_specs=[pl.BlockSpec((tile, in_p), lambda i: (i, 0))]
                     + [_resident_spec(a) for a in flat_p],
            out_specs=(
                pl.BlockSpec((tile, in_p), lambda i: (i, 0)),
                pl.BlockSpec((tile, 128), lambda i: (i, 0)),
            ),
            out_shape=out_shapes,
            compiler_params=pltpu.CompilerParams(
                dimension_semantics=("parallel",),
                vmem_limit_bytes=vmem_limit),
            cost_estimate=pl.CostEstimate(
                flops=int(flops), transcendentals=0,
                bytes_accessed=int(bytes_accessed)),
        )(xp, *flat_p)

        if return_padded:
            return recon_pad, bot_pad   # caller consumes padded slabs directly

        recon = recon_pad if (B_pad == B and in_p == in_size) else recon_pad[:B, :in_size]
        return recon, bot_pad[:B, :64]

    jitted = jax.jit(_forward_impl)

    def forward(x):
        return jitted(x, *flat)

    return forward


# --------------------------- init & references -------------------------------

def init_params(key, in_size):
    """torch.nn.Linear default init: U(-1/sqrt(fan_in), 1/sqrt(fan_in)).
    Weights stored transposed: [fan_in, fan_out]."""
    dims = _layer_dims(in_size)
    params = {}
    keys = jax.random.split(key, 2 * len(dims))
    for idx, (fan_in, fan_out) in enumerate(dims):
        bound = 1.0 / math.sqrt(fan_in)
        params[f"w{idx + 1}"] = jax.random.uniform(
            keys[2 * idx], (fan_in, fan_out),
            minval=-bound, maxval=bound, dtype=jnp.float32)
        params[f"b{idx + 1}"] = jax.random.uniform(
            keys[2 * idx + 1], (1, fan_out),
            minval=-bound, maxval=bound, dtype=jnp.float32)
    return params


def reference_forward(x, params):
    """Pure-JAX full-f32 reference."""
    h = jnp.maximum(x @ params["w1"] + params["b1"], 0.0)
    h = h @ params["w2"] + params["b2"]
    z = h @ params["w3"] + params["b3"]
    d = z @ params["w4"] + params["b4"]
    d = jnp.maximum(d @ params["w5"] + params["b5"], 0.0)
    y = d @ params["w6"] + params["b6"]
    return y, z


def reference_forward_matched(x, params, in_size, weight_dtype=jnp.bfloat16):
    """Pure-JAX reference with the kernel's matmul numerics
    (bf16 MXU inputs, f32 accumulation, zero-padded feature dims)."""
    pparams, _, in_p = pad_params(params, in_size, weight_dtype)
    xp = jnp.pad(x.astype(weight_dtype), ((0, 0), (0, in_p - in_size)))

    def lin(a, w, b):
        return jnp.dot(a.astype(w.dtype), w,
                       preferred_element_type=jnp.float32) + b

    h = jnp.maximum(lin(xp, pparams["w1"], pparams["b1"]), 0.0)
    h = lin(h, pparams["w2"], pparams["b2"])
    z = lin(h, pparams["w3"], pparams["b3"])
    d = lin(z, pparams["w4"], pparams["b4"])
    d = jnp.maximum(lin(d, pparams["w5"], pparams["b5"]), 0.0)
    y = lin(d, pparams["w6"], pparams["b6"])
    return y[:, :in_size], z[:, :64]


# --------------------------------- demo --------------------------------------

if __name__ == "__main__":
    key = jax.random.PRNGKey(0)
    k_param, k_x = jax.random.split(key)

    IN_SIZE = 32
    BATCH = 256          # >= 128 so the Pallas kernel path is exercised

    params = init_params(k_param, IN_SIZE)
    x = jax.random.normal(k_x, (BATCH, IN_SIZE), dtype=jnp.float32)

    forward = make_num_ae_forward(params, IN_SIZE)   # padded weights hoisted here

    recon, bottleneck = forward(x)
    recon = jax.block_until_ready(recon)
    bottleneck = jax.block_until_ready(bottleneck)
    assert recon.shape == (BATCH, IN_SIZE) and bottleneck.shape == (BATCH, 64)

    # Tight check vs a pure-JAX path with identical matmul numerics
    # (recon is additionally rounded to bf16 by the kernel output dtype).
    ref_y, ref_z = reference_forward_matched(x, params, IN_SIZE)
    assert jnp.allclose(recon.astype(jnp.float32), ref_y, atol=3e-2, rtol=3e-2)
    assert jnp.allclose(bottleneck, ref_z, atol=5e-3, rtol=5e-3)

    # Looser check vs the full-f32 unpadded reference (bf16 rounding only).
    f32_y, f32_z = reference_forward(x, params)
    assert jnp.allclose(recon.astype(jnp.float32), f32_y, atol=1e-1, rtol=1e-1)
    assert jnp.allclose(bottleneck, f32_z, atol=8e-2, rtol=8e-2)

    # Tiny-batch path (fused XLA fallback with the SAME bf16 numerics).
    r_s, b_s = forward(x[:8])
    r_s = jax.block_until_ready(r_s)
    assert r_s.shape == (8, IN_SIZE) and b_s.shape == (8, 64)
    assert jnp.allclose(r_s.astype(jnp.float32), ref_y[:8], atol=3e-2, rtol=3e-2)
    assert jnp.allclose(b_s, ref_z[:8], atol=5e-3, rtol=5e-3)

    print("KERNEL_OK")
</pallas_src>

<mosaic_0001>
module attributes {stable_mosaic.version = 11 : i64} {
  func.func @_probe(%arg0: i32, %arg1: memref<8x128xf32, #tpu.memory_space<vmem>>, %arg2: memref<8x128xf32, #tpu.memory_space<vmem>>) attributes {dimension_semantics = [#tpu.dimension_semantics<arbitrary>], iteration_bounds = array<i64: 2>, scalar_prefetch = 0 : i64, scratch_operands = 0 : i64, tpu.core_type = #tpu.core_type<tc>, window_params = [{pipeline_mode = #tpu.pipeline_mode<synchronous>, transform_indices = @transform_0, window_bounds = array<i64: 8, 128>}, {transform_indices = @transform_1, window_bounds = array<i64: 8, 128>}]} {
    %c0 = arith.constant 0 : index
    %c0_0 = arith.constant 0 : index
    %0 = vector.load %arg1[%c0, %c0_0] : memref<8x128xf32, #tpu.memory_space<vmem>>, vector<8x128xf32>
    %cst = arith.constant 1.000000e+00 : f32
    %1 = vector.broadcast %cst : f32 to vector<8x128xf32>
    %2 = arith.addf %0, %1 : vector<8x128xf32>
    %c0_1 = arith.constant 0 : index
    %c0_2 = arith.constant 0 : index
    %3 = vector.load %arg2[%c0_1, %c0_2] : memref<8x128xf32, #tpu.memory_space<vmem>>, vector<8x128xf32>
    tpu.vector_store %arg2[%c0_1, %c0_2], %2 {strides = array<i32>} : memref<8x128xf32, #tpu.memory_space<vmem>>, vector<8x128xf32>,
    return
  }
  func.func @transform_0(%arg0: i32) -> (i32, i32) {
    %c0_i32 = arith.constant 0 : i32
    %c0_i32_0 = arith.constant 0 : i32
    %c0_i32_1 = arith.constant 0 : i32
    return %c0_i32, %c0_i32_0 : i32, i32
  }
  func.func @transform_1(%arg0: i32) -> (i32, i32) {
    %c0_i32 = arith.constant 0 : i32
    %c0_i32_0 = arith.constant 0 : i32
    return %arg0, %c0_i32 : i32, i32
  }
}

module attributes {stable_mosaic.version = 11 : i64} {
  func.func @ae_kernel(%arg0: i32, %arg1: memref<256x128xbf16, #tpu.memory_space<vmem>>, %arg2: memref<128x256xbf16, #tpu.memory_space<vmem>>, %arg3: memref<1x256xf32, #tpu.memory_space<vmem>>, %arg4: memref<256x128xbf16, #tpu.memory_space<vmem>>, %arg5: memref<1x128xf32, #tpu.memory_space<vmem>>, %arg6: memref<128x128xbf16, #tpu.memory_space<vmem>>, %arg7: memref<1x128xf32, #tpu.memory_space<vmem>>, %arg8: memref<128x128xbf16, #tpu.memory_space<vmem>>, %arg9: memref<1x128xf32, #tpu.memory_space<vmem>>, %arg10: memref<128x256xbf16, #tpu.memory_space<vmem>>, %arg11: memref<1x256xf32, #tpu.memory_space<vmem>>, %arg12: memref<256x128xbf16, #tpu.memory_space<vmem>>, %arg13: memref<1x128xf32, #tpu.memory_space<vmem>>, %arg14: memref<256x128xbf16, #tpu.memory_space<vmem>>, %arg15: memref<256x128xf32, #tpu.memory_space<vmem>>) attributes {dimension_semantics = [#tpu.dimension_semantics<parallel>], iteration_bounds = array<i64: 1>, scalar_prefetch = 0 : i64, scratch_operands = 0 : i64, tpu.core_type = #tpu.core_type<tc>, window_params = [{transform_indices = @transform_0, window_bounds = array<i64: 256, 128>}, {pipeline_mode = #tpu.pipeline_mode<synchronous>, transform_indices = @transform_1, window_bounds = array<i64: 128, 256>}, {pipeline_mode = #tpu.pipeline_mode<synchronous>, transform_indices = @transform_2, window_bounds = array<i64: 1, 256>}, {pipeline_mode = #tpu.pipeline_mode<synchronous>, transform_indices = @transform_3, window_bounds = array<i64: 256, 128>}, {pipeline_mode = #tpu.pipeline_mode<synchronous>, transform_indices = @transform_4, window_bounds = array<i64: 1, 128>}, {pipeline_mode = #tpu.pipeline_mode<synchronous>, transform_indices = @transform_5, window_bounds = array<i64: 128, 128>}, {pipeline_mode = #tpu.pipeline_mode<synchronous>, transform_indices = @transform_6, window_bounds = array<i64: 1, 128>}, {pipeline_mode = #tpu.pipeline_mode<synchronous>, transform_indices = @transform_7, window_bounds = array<i64: 128, 128>}, {pipeline_mode = #tpu.pipeline_mode<synchronous>, transform_indices = @transform_8, window_bounds = array<i64: 1, 128>}, {pipeline_mode = #tpu.pipeline_mode<synchronous>, transform_indices = @transform_9, window_bounds = array<i64: 128, 256>}, {pipeline_mode = #tpu.pipeline_mode<synchronous>, transform_indices = @transform_10, window_bounds = array<i64: 1, 256>}, {pipeline_mode = #tpu.pipeline_mode<synchronous>, transform_indices = @transform_11, window_bounds = array<i64: 256, 128>}, {pipeline_mode = #tpu.pipeline_mode<synchronous>, transform_indices = @transform_12, window_bounds = array<i64: 1, 128>}, {transform_indices = @transform_13, window_bounds = array<i64: 256, 128>}, {transform_indices = @transform_14, window_bounds = array<i64: 256, 128>}]} {
    %c0 = arith.constant 0 : index
    %c0_0 = arith.constant 0 : index
    %0 = vector.load %arg1[%c0, %c0_0] : memref<256x128xbf16, #tpu.memory_space<vmem>>, vector<256x128xbf16>
    %c0_1 = arith.constant 0 : index
    %c0_2 = arith.constant 0 : index
    %1 = vector.load %arg2[%c0_1, %c0_2] : memref<128x256xbf16, #tpu.memory_space<vmem>>, vector<128x256xbf16>
    %cst = arith.constant dense<0.000000e+00> : vector<256x256xf32>
    %2 = tpu.matmul %0, %1, %cst {dimension_numbers = #tpu.dot_dimension_numbers<[1], [0], [0], [1], [0, 0, 1, 1], [], []>} : vector<256x128xbf16>, vector<128x256xbf16>, vector<256x256xf32> -> vector<256x256xf32>
    %c0_3 = arith.constant 0 : index
    %c0_4 = arith.constant 0 : index
    %3 = vector.load %arg3[%c0_3, %c0_4] : memref<1x256xf32, #tpu.memory_space<vmem>>, vector<1x256xf32>
    %4 = vector.broadcast %3 : vector<1x256xf32> to vector<256x256xf32>
    %5 = arith.addf %2, %4 : vector<256x256xf32>
    %cst_5 = arith.constant 0.000000e+00 : f32
    %6 = vector.broadcast %cst_5 : f32 to vector<256x256xf32>
    %7 = arith.maximumf %5, %6 : vector<256x256xf32>
    %8 = arith.truncf %7 : vector<256x256xf32> to vector<256x256xbf16>
    %c0_6 = arith.constant 0 : index
    %c0_7 = arith.constant 0 : index
    %9 = vector.load %arg4[%c0_6, %c0_7] : memref<256x128xbf16, #tpu.memory_space<vmem>>, vector<256x128xbf16>
    %cst_8 = arith.constant dense<0.000000e+00> : vector<256x128xf32>
    %10 = tpu.matmul %8, %9, %cst_8 {dimension_numbers = #tpu.dot_dimension_numbers<[1], [0], [0], [1], [0, 0, 1, 1], [], []>} : vector<256x256xbf16>, vector<256x128xbf16>, vector<256x128xf32> -> vector<256x128xf32>
    %c0_9 = arith.constant 0 : index
    %c0_10 = arith.constant 0 : index
    %11 = vector.load %arg5[%c0_9, %c0_10] : memref<1x128xf32, #tpu.memory_space<vmem>>, vector<1x128xf32>
    %12 = vector.broadcast %11 : vector<1x128xf32> to vector<256x128xf32>
    %13 = arith.addf %10, %12 : vector<256x128xf32>
    %14 = arith.truncf %13 : vector<256x128xf32> to vector<256x128xbf16>
    %c0_11 = arith.constant 0 : index
    %c0_12 = arith.constant 0 : index
    %15 = vector.load %arg6[%c0_11, %c0_12] : memref<128x128xbf16, #tpu.memory_space<vmem>>, vector<128x128xbf16>
    %cst_13 = arith.constant dense<0.000000e+00> : vector<256x128xf32>
    %16 = tpu.matmul %14, %15, %cst_13 {dimension_numbers = #tpu.dot_dimension_numbers<[1], [0], [0], [1], [0, 0, 1, 1], [], []>} : vector<256x128xbf16>, vector<128x128xbf16>, vector<256x128xf32> -> vector<256x128xf32>
    %c0_14 = arith.constant 0 : index
    %c0_15 = arith.constant 0 : index
    %17 = vector.load %arg7[%c0_14, %c0_15] : memref<1x128xf32, #tpu.memory_space<vmem>>, vector<1x128xf32>
    %18 = vector.broadcast %17 : vector<1x128xf32> to vector<256x128xf32>
    %19 = arith.addf %16, %18 : vector<256x128xf32>
    %c0_16 = arith.constant 0 : index
    %c0_17 = arith.constant 0 : index
    %20 = vector.load %arg15[%c0_16, %c0_17] : memref<256x128xf32, #tpu.memory_space<vmem>>, vector<256x128xf32>
    tpu.vector_store %arg15[%c0_16, %c0_17], %19 {strides = array<i32>} : memref<256x128xf32, #tpu.memory_space<vmem>>, vector<256x128xf32>,
    %21 = arith.truncf %19 : vector<256x128xf32> to vector<256x128xbf16>
    %c0_18 = arith.constant 0 : index
    %c0_19 = arith.constant 0 : index
    %22 = vector.load %arg8[%c0_18, %c0_19] : memref<128x128xbf16, #tpu.memory_space<vmem>>, vector<128x128xbf16>
    %cst_20 = arith.constant dense<0.000000e+00> : vector<256x128xf32>
    %23 = tpu.matmul %21, %22, %cst_20 {dimension_numbers = #tpu.dot_dimension_numbers<[1], [0], [0], [1], [0, 0, 1, 1], [], []>} : vector<256x128xbf16>, vector<128x128xbf16>, vector<256x128xf32> -> vector<256x128xf32>
    %c0_21 = arith.constant 0 : index
    %c0_22 = arith.constant 0 : index
    %24 = vector.load %arg9[%c0_21, %c0_22] : memref<1x128xf32, #tpu.memory_space<vmem>>, vector<1x128xf32>
    %25 = vector.broadcast %24 : vector<1x128xf32> to vector<256x128xf32>
    %26 = arith.addf %23, %25 : vector<256x128xf32>
    %27 = arith.truncf %26 : vector<256x128xf32> to vector<256x128xbf16>
    %c0_23 = arith.constant 0 : index
    %c0_24 = arith.constant 0 : index
    %28 = vector.load %arg10[%c0_23, %c0_24] : memref<128x256xbf16, #tpu.memory_space<vmem>>, vector<128x256xbf16>
    %cst_25 = arith.constant dense<0.000000e+00> : vector<256x256xf32>
    %29 = tpu.matmul %27, %28, %cst_25 {dimension_numbers = #tpu.dot_dimension_numbers<[1], [0], [0], [1], [0, 0, 1, 1], [], []>} : vector<256x128xbf16>, vector<128x256xbf16>, vector<256x256xf32> -> vector<256x256xf32>
    %c0_26 = arith.constant 0 : index
    %c0_27 = arith.constant 0 : index
    %30 = vector.load %arg11[%c0_26, %c0_27] : memref<1x256xf32, #tpu.memory_space<vmem>>, vector<1x256xf32>
    %31 = vector.broadcast %30 : vector<1x256xf32> to vector<256x256xf32>
    %32 = arith.addf %29, %31 : vector<256x256xf32>
    %cst_28 = arith.constant 0.000000e+00 : f32
    %33 = vector.broadcast %cst_28 : f32 to vector<256x256xf32>
    %34 = arith.maximumf %32, %33 : vector<256x256xf32>
    %35 = arith.truncf %34 : vector<256x256xf32> to vector<256x256xbf16>
    %c0_29 = arith.constant 0 : index
    %c0_30 = arith.constant 0 : index
    %36 = vector.load %arg12[%c0_29, %c0_30] : memref<256x128xbf16, #tpu.memory_space<vmem>>, vector<256x128xbf16>
    %cst_31 = arith.constant dense<0.000000e+00> : vector<256x128xf32>
    %37 = tpu.matmul %35, %36, %cst_31 {dimension_numbers = #tpu.dot_dimension_numbers<[1], [0], [0], [1], [0, 0, 1, 1], [], []>} : vector<256x256xbf16>, vector<256x128xbf16>, vector<256x128xf32> -> vector<256x128xf32>
    %c0_32 = arith.constant 0 : index
    %c0_33 = arith.constant 0 : index
    %38 = vector.load %arg13[%c0_32, %c0_33] : memref<1x128xf32, #tpu.memory_space<vmem>>, vector<1x128xf32>
    %39 = vector.broadcast %38 : vector<1x128xf32> to vector<256x128xf32>
    %40 = arith.addf %37, %39 : vector<256x128xf32>
    %41 = arith.truncf %40 : vector<256x128xf32> to vector<256x128xbf16>
    %c0_34 = arith.constant 0 : index
    %c0_35 = arith.constant 0 : index
    %42 = vector.load %arg14[%c0_34, %c0_35] : memref<256x128xbf16, #tpu.memory_space<vmem>>, vector<256x128xbf16>
    tpu.vector_store %arg14[%c0_34, %c0_35], %41 {strides = array<i32>} : memref<256x128xbf16, #tpu.memory_space<vmem>>, vector<256x128xbf16>,
    return
  }
  func.func @transform_0(%arg0: i32) -> (i32, i32) {
    %c0_i32 = arith.constant 0 : i32
    %c0_i32_0 = arith.constant 0 : i32
    return %arg0, %c0_i32 : i32, i32
  }
  func.func @transform_1(%arg0: i32) -> (i32, i32) {
    %c0_i32 = arith.constant 0 : i32
    %c0_i32_0 = arith.constant 0 : i32
    %c0_i32_1 = arith.constant 0 : i32
    return %c0_i32, %c0_i32_0 : i32, i32
  }
  func.func @transform_2(%arg0: i32) -> (i32, i32) {
    %c0_i32 = arith.constant 0 : i32
    %c0_i32_0 = arith.constant 0 : i32
    %c0_i32_1 = arith.constant 0 : i32
    return %c0_i32, %c0_i32_0 : i32, i32
  }
  func.func @transform_3(%arg0: i32) -> (i32, i32) {
    %c0_i32 = arith.constant 0 : i32
    %c0_i32_0 = arith.constant 0 : i32
    %c0_i32_1 = arith.constant 0 : i32
    return %c0_i32, %c0_i32_0 : i32, i32
  }
  func.func @transform_4(%arg0: i32) -> (i32, i32) {
    %c0_i32 = arith.constant 0 : i32
    %c0_i32_0 = arith.constant 0 : i32
    %c0_i32_1 = arith.constant 0 : i32
    return %c0_i32, %c0_i32_0 : i32, i32
  }
  func.func @transform_5(%arg0: i32) -> (i32, i32) {
    %c0_i32 = arith.constant 0 : i32
    %c0_i32_0 = arith.constant 0 : i32
    %c0_i32_1 = arith.constant 0 : i32
    return %c0_i32, %c0_i32_0 : i32, i32
  }
  func.func @transform_6(%arg0: i32) -> (i32, i32) {
    %c0_i32 = arith.constant 0 : i32
    %c0_i32_0 = arith.constant 0 : i32
    %c0_i32_1 = arith.constant 0 : i32
    return %c0_i32, %c0_i32_0 : i32, i32
  }
  func.func @transform_7(%arg0: i32) -> (i32, i32) {
    %c0_i32 = arith.constant 0 : i32
    %c0_i32_0 = arith.constant 0 : i32
    %c0_i32_1 = arith.constant 0 : i32
    return %c0_i32, %c0_i32_0 : i32, i32
  }
  func.func @transform_8(%arg0: i32) -> (i32, i32) {
    %c0_i32 = arith.constant 0 : i32
    %c0_i32_0 = arith.constant 0 : i32
    %c0_i32_1 = arith.constant 0 : i32
    return %c0_i32, %c0_i32_0 : i32, i32
  }
  func.func @transform_9(%arg0: i32) -> (i32, i32) {
    %c0_i32 = arith.constant 0 : i32
    %c0_i32_0 = arith.constant 0 : i32
    %c0_i32_1 = arith.constant 0 : i32
    return %c0_i32, %c0_i32_0 : i32, i32
  }
  func.func @transform_10(%arg0: i32) -> (i32, i32) {
    %c0_i32 = arith.constant 0 : i32
    %c0_i32_0 = arith.constant 0 : i32
    %c0_i32_1 = arith.constant 0 : i32
    return %c0_i32, %c0_i32_0 : i32, i32
  }
  func.func @transform_11(%arg0: i32) -> (i32, i32) {
    %c0_i32 = arith.constant 0 : i32
    %c0_i32_0 = arith.constant 0 : i32
    %c0_i32_1 = arith.constant 0 : i32
    return %c0_i32, %c0_i32_0 : i32, i32
  }
  func.func @transform_12(%arg0: i32) -> (i32, i32) {
    %c0_i32 = arith.constant 0 : i32
    %c0_i32_0 = arith.constant 0 : i32
    %c0_i32_1 = arith.constant 0 : i32
    return %c0_i32, %c0_i32_0 : i32, i32
  }
  func.func @transform_13(%arg0: i32) -> (i32, i32) {
    %c0_i32 = arith.constant 0 : i32
    %c0_i32_0 = arith.constant 0 : i32
    return %arg0, %c0_i32 : i32, i32
  }
  func.func @transform_14(%arg0: i32) -> (i32, i32) {
    %c0_i32 = arith.constant 0 : i32
    %c0_i32_0 = arith.constant 0 : i32
    return %arg0, %c0_i32 : i32, i32
  }
}

</mosaic_0001>

<llo_original>
// kernel: tpu_custom_call.1
$region0: #{tpu_custom_call.1}
  #allocation0 [shape = 'u32[]', space=smem, size = 0x4, offset = 0x4, fixed_abs, tag = 'smem constant byte address 0x4 - core index']
  #allocation1 [shape = 'u32[144,128]{1,0:T(1,128)}', space=vmem, size = 0x12000, scoped, tag = 'internal scratch']
  %s0 = inlined_call_operand.hbm [shape: f32[8,128], index: 0, kind: input, shape index: {}]
  %s1 = inlined_call_operand.hbm [shape: f32[16,128], index: 1, kind: output, shape index: {}]
  %s2 = sld [smem:[#allocation0]]
  $region41: #{tpu_custom_call.1} parent=0
    _
  %s4 = ssub.s32 1, %s2
  %s5 = scalar_select 0, %s4, %s2
  $region1: #{tpu_custom_call.1} parent=0
    #allocation2 [shape = 'u8[4096]{0}', space=vmem, size = 0x1000, scoped, tag = 'input window, operand 0, single buffered']
    #allocation3 [shape = 's32[2]{0}', space=sflag, size = 0x8, scoped, tag = 'scoped memory for tpu_custom_call.1']
    #allocation4 [shape = 's32[2]{0}', space=sflag, size = 0x8, scoped, tag = 'scoped memory for tpu_custom_call.1']
    #allocation5 [shape = 'u8[8192]{0}', space=vmem, size = 0x2000, scoped, tag = 'output window, operand 0']
    %6 = vsyncpa [#allocation3], 0
    %7 = vsyncpa [#allocation4], 0
    %s8 = scalar_lea.sflag [#allocation4], 1
    %9 = vsyncpa %s8, 0
    loop: start=0, step=1, limit=4
    $region2: #{tpu_custom_call.1} parent=1 // loop_pre_header
      _
    $region3: #{tpu_custom_call.1} parent=1 // loop_header
      %s11 = sphi 0, %s15
      %p12 = scmp.ge.s32.totalorder %s11, 4
      %s19 = sphi 0, %s19
      %s21 = sphi 0, %s19
      %s22 = sphi 0, %s21
      %s36 = sphi 0, %s22
      %s42 = sphi 0, %s44
      %s45 = sphi 0, %s42
      %s46 = sphi 0, %s45
      %s62 = sphi 0, %s46
    $region4: #{tpu_custom_call.1} parent=1 // loop_header_branch
      %14 = sbr.rel (%p12) target = $region8
    $region5: #{tpu_custom_call.1} parent=1 // loop_body
      %s16 = ssub.s32 %s11, 1
      %s17 = ssub.s32 %s11, 2
      %s18 = sadd.s32 %s11, 1
      %s20 = sadd.s32 %s19, 1
      %p23 = scmp.eq.s32.totalorder %s11, 1
      %p24 = scmp.ne.s32.totalorder %s19, %s21
      %p25 = scmp.eq.s32.totalorder %s11, 0
      %p26 = por %p24, %p25
      %p27 = scmp.ne.s32.totalorder %s19, %s21
      %p28 = scmp.eq.s32.totalorder %s16, 1
      %p29 = por %p27, %p28
      %p30 = scmp.ne.s32.totalorder %s21, %s22
      %p31 = scmp.eq.s32.totalorder %s16, 0
      %p32 = por %p30, %p31
      %p33 = scmp.ne.s32.totalorder %s21, %s22
      %p34 = scmp.eq.s32.totalorder %s17, 1
      %p35 = por %p33, %p34
      %p37 = scmp.ne.s32.totalorder %s22, %s36
      %p38 = scmp.eq.s32.totalorder %s17, 0
      %p39 = por %p37, %p38
      %s40 = ssub.s32 %s11, %s18
      %p41 = scmp.eq.s32.totalorder %s40, 0
      %s43 = sadd.s32 %s42, 1
      %s44 = scalar_select %p41, %s42, %s43
      %p47 = pneg %p41
      %p48 = scmp.eq.s32.totalorder %s11, 1
      %p49 = por %p47, %p48
      %p50 = scmp.ne.s32.totalorder %s42, %s45
      %p51 = scmp.eq.s32.totalorder %s11, 0
      %p52 = por %p50, %p51
      %p53 = scmp.ne.s32.totalorder %s42, %s45
      %p54 = scmp.eq.s32.totalorder %s16, 1
      %p55 = por %p53, %p54
      %p56 = scmp.ne.s32.totalorder %s45, %s46
      %p57 = scmp.eq.s32.totalorder %s16, 0
      %p58 = por %p56, %p57
      %p59 = scmp.ne.s32.totalorder %s45, %s46
      %p60 = scmp.eq.s32.totalorder %s17, 1
      %p61 = por %p59, %p60
      %p63 = scmp.ne.s32.totalorder %s46, %s62
      %p64 = scmp.eq.s32.totalorder %s17, 0
      %p65 = por %p63, %p64
      %p66 = scmp.le.s32.totalorder 1, %s11
      %p67 = scmp.lt.s32.totalorder %s11, 3
      %p68 = pnand %p66, %p67
      %p69 = pneg %p68
      // Predicated region
      $region9: #{tpu_custom_call.1} parent=5 // pred_check
        _
      $region10: #{tpu_custom_call.1} parent=5 // pred_check_branch
        %71 = sbr.rel (%p68) target = $region12
      $region11: #{tpu_custom_call.1} parent=5 // pred_region
        %s72 = ssub.s32 %s11, 1
        // Predicated region
        $region13: #{tpu_custom_call.1} parent=11 // pred_check
          %p73 = pneg %p32
        $region14: #{tpu_custom_call.1} parent=11 // pred_check_branch
          %75 = sbr.rel (%p73) target = $region16
        $region15: #{tpu_custom_call.1} parent=11 // pred_region
          %s77 = ssub.s32 128, 128
          %78 = vsyncadd [#allocation3], %s77
          %s80 = sshll.u32 [#allocation2], 4
          %s81 = int_to_ptr.vmem [resolvable:$true] %s80
          %83 = dma.hbm_to_vmem [thread:$0]  %s0, 128, %s81, [#allocation3]
        $region16: #{tpu_custom_call.1} parent=11 // pred_fallthru
          _
      $region12: #{tpu_custom_call.1} parent=5 // pred_fallthru
        _
      %p84 = scmp.lt.s32.totalorder %s11, 2
      // Predicated region
      $region17: #{tpu_custom_call.1} parent=5 // pred_check
        %p85 = pneg %p84
      $region18: #{tpu_custom_call.1} parent=5 // pred_check_branch
        %87 = sbr.rel (%p85) target = $region20
      $region19: #{tpu_custom_call.1} parent=5 // pred_region
        _
      $region20: #{tpu_custom_call.1} parent=5 // pred_fallthru
        _
      %p88 = scmp.le.s32.totalorder 1, %s11
      %p89 = scmp.lt.s32.totalorder %s11, 3
      %p90 = pnand %p88, %p89
      %p91 = pneg %p90
      // Predicated region
      $region21: #{tpu_custom_call.1} parent=5 // pred_check
        _
      $region22: #{tpu_custom_call.1} parent=5 // pred_check_branch
        %93 = sbr.rel (%p90) target = $region24
      $region23: #{tpu_custom_call.1} parent=5 // pred_region
        %s94 = ssub.s32 %s11, 1
        // Predicated region
        $region25: #{tpu_custom_call.1} parent=23 // pred_check
          %p95 = pneg %p32
        $region26: #{tpu_custom_call.1} parent=23 // pred_check_branch
          %97 = sbr.rel (%p95) target = $region28
        $region27: #{tpu_custom_call.1} parent=23 // pred_region
          %98 = dma.done [#allocation3], 128
        $region28: #{tpu_custom_call.1} parent=23 // pred_fallthru
          _
        %p99 = pneg %p32
        %p100 = pneg %p29
        %p101 = pneg %p58
        %p102 = pneg %p55
        %s103 = sand.u32 %s45, 1
        %s104 = scalar_lea.sflag [#allocation4], %s103
        %s105 = sand.u32 %s45, 1
        %s106 = smul.addr %s105, 8
        %s107 = scalar_lea.vmem [#allocation5], %s106
        %v108 = vld [vmem:[#allocation2] sm:$0xff]
        %v109 = vadd.f32 %v108, 1.0
        %110 = vst [vmem:[%s107] sm:$0xff] %v109
        %s111 = sand.u32 %s45, 1
        %s112 = scalar_lea.sflag [#allocation4], %s111
        %s113 = sand.u32 %s45, 1
        %s114 = smul.addr %s113, 8
        %s115 = scalar_lea.vmem [#allocation5], %s114
        // Predicated region
        $region29: #{tpu_custom_call.1} parent=23 // pred_check
          %p116 = pneg %p55
        $region30: #{tpu_custom_call.1} parent=23 // pred_check_branch
          %118 = sbr.rel (%p116) target = $region32
        $region31: #{tpu_custom_call.1} parent=23 // pred_region
          %s120 = ssub.s32 128, 128
          %121 = vsyncadd %s112, %s120
          %s122 = smul.addr %s16, 128
          %s123 = scalar_lea.hbm %s1, %s122
          %s125 = sshll.u32 %s115, 4
          %s126 = int_to_ptr.vmem [resolvable:$true] %s125
          %128 = dma.vmem_to_hbm [thread:$0]  %s126, 128, %s123, %s112
        $region32: #{tpu_custom_call.1} parent=23 // pred_fallthru
          _
      $region24: #{tpu_custom_call.1} parent=5 // pred_fallthru
        _
      %p129 = scmp.le.s32.totalorder 2, %s11
      // Predicated region
      $region33: #{tpu_custom_call.1} parent=5 // pred_check
        %p130 = pneg %p129
      $region34: #{tpu_custom_call.1} parent=5 // pred_check_branch
        %132 = sbr.rel (%p130) target = $region36
      $region35: #{tpu_custom_call.1} parent=5 // pred_region
        %s133 = ssub.s32 %s11, 2
        // Predicated region
        $region37: #{tpu_custom_call.1} parent=35 // pred_check
          %p134 = pneg %p61
        $region38: #{tpu_custom_call.1} parent=35 // pred_check_branch
          %136 = sbr.rel (%p134) target = $region40
        $region39: #{tpu_custom_call.1} parent=35 // pred_region
          %s137 = sand.u32 %s46, 1
          %s138 = scalar_lea.sflag [#allocation4], %s137
          %s139 = sand.u32 %s46, 1
          %s140 = smul.addr %s139, 8
          %s141 = scalar_lea.vmem [#allocation5], %s140
          %142 = dma.done %s138, 128
        $region40: #{tpu_custom_call.1} parent=35 // pred_fallthru
          _
      $region36: #{tpu_custom_call.1} parent=5 // pred_fallthru
        _
    $region6: #{tpu_custom_call.1} parent=1 // loop_footer
      %s15 = sadd.s32 1, %s11
    $region7: #{tpu_custom_call.1} parent=1 // loop_footer_branch
      %10 = sbr.rel target = $region3
    $region8: #{tpu_custom_call.1} parent=1 // loop_exit
      _
    %143 = vsyncpa [#allocation3], 1
    %s144 = scalar_lea.sflag [#allocation3], 1
    %145 = vsyncpa %s144, 1
    %146 = vsyncpa [#allocation4], 1
    %s147 = scalar_lea.sflag [#allocation4], 1
    %148 = vsyncpa %s147, 1

// kernel: _forward_impl.1
$region0: #{_forward_impl.1}
  #allocation0 [shape = 'u32[]', space=smem, size = 0x4, offset = 0x4, fixed_abs, tag = 'smem constant byte address 0x4 - core index']
  #allocation1 [shape = 'u32[144,128]{1,0:T(1,128)}', space=vmem, size = 0x12000, scoped, tag = 'internal scratch']
  %s0 = inlined_call_operand.vmem [shape: bf16[256,128], index: 0, kind: input, shape index: {}]
  %s1 = inlined_call_operand.vmem [shape: bf16[128,256], index: 1, kind: input, shape index: {}]
  %s2 = inlined_call_operand.vmem [shape: f32[1,256], index: 2, kind: input, shape index: {}]
  %s3 = inlined_call_operand.vmem [shape: bf16[256,128], index: 3, kind: input, shape index: {}]
  %s4 = inlined_call_operand.vmem [shape: f32[1,128], index: 4, kind: input, shape index: {}]
  %s5 = inlined_call_operand.hbm [shape: bf16[128,128], index: 5, kind: input, shape index: {}]
  %s6 = inlined_call_operand.vmem [shape: f32[1,128], index: 6, kind: input, shape index: {}]
  %s7 = inlined_call_operand.hbm [shape: bf16[128,128], index: 7, kind: input, shape index: {}]
  %s8 = inlined_call_operand.vmem [shape: f32[1,128], index: 8, kind: input, shape index: {}]
  %s9 = inlined_call_operand.vmem [shape: bf16[128,256], index: 9, kind: input, shape index: {}]
  %s10 = inlined_call_operand.vmem [shape: f32[1,256], index: 10, kind: input, shape index: {}]
  %s11 = inlined_call_operand.vmem [shape: bf16[256,128], index: 11, kind: input, shape index: {}]
  %s12 = inlined_call_operand.vmem [shape: f32[1,128], index: 12, kind: input, shape index: {}]
  %s13 = inlined_call_operand.vmem [shape: bf16[256,128], index: 13, kind: output, shape index: {0}]
  %s14 = inlined_call_operand.vmem [shape: f32[256,128], index: 14, kind: output, shape index: {1}]
  %15 = xla_tuple %s13, %s14
  %s16 = sld [smem:[#allocation0]]
  $region78: #{_forward_impl.1} parent=0
    _
  %s18 = ssub.s32 1, %s16
  %s19 = scalar_select 0, %s18, %s16
  $region1: #{_forward_impl.1} parent=0
    #allocation2 [shape = 'u8[32768]{0}', space=vmem, size = 0x8000, scoped, tag = 'input window, operand 5, single buffered']
    #allocation3 [shape = 's32[1]{0}', space=sflag, size = 0x4, scoped, tag = 'scoped memory for _forward_impl.1']
    #allocation4 [shape = 'u8[32768]{0}', space=vmem, size = 0x8000, scoped, tag = 'input window, operand 7, single buffered']
    #allocation5 [shape = 's32[1]{0}', space=sflag, size = 0x4, scoped, tag = 'scoped memory for _forward_impl.1']
    %20 = vsyncpa [#allocation3], 0
    %21 = vsyncpa [#allocation5], 0
    // Predicated region
    $region2: #{_forward_impl.1} parent=1 // pred_check
      _
    $region3: #{_forward_impl.1} parent=1 // pred_check_branch
      %23 = sbr.rel (0) target = $region5
    $region4: #{_forward_impl.1} parent=1 // pred_region
      _
    $region5: #{_forward_impl.1} parent=1 // pred_fallthru
      _
    // Predicated region
    $region6: #{_forward_impl.1} parent=1 // pred_check
      _
    $region7: #{_forward_impl.1} parent=1 // pred_check_branch
      %25 = sbr.rel (0) target = $region9
    $region8: #{_forward_impl.1} parent=1 // pred_region
      _
    $region9: #{_forward_impl.1} parent=1 // pred_fallthru
      _
    // Predicated region
    $region10: #{_forward_impl.1} parent=1 // pred_check
      _
    $region11: #{_forward_impl.1} parent=1 // pred_check_branch
      %27 = sbr.rel (0) target = $region13
    $region12: #{_forward_impl.1} parent=1 // pred_region
      _
    $region13: #{_forward_impl.1} parent=1 // pred_fallthru
      _
    // Predicated region
    $region14: #{_forward_impl.1} parent=1 // pred_check
      _
    $region15: #{_forward_impl.1} parent=1 // pred_check_branch
      %29 = sbr.rel (0) target = $region17
    $region16: #{_forward_impl.1} parent=1 // pred_region
      _
    $region17: #{_forward_impl.1} parent=1 // pred_fallthru
      _
    // Predicated region
    $region18: #{_forward_impl.1} parent=1 // pred_check
      _
    $region19: #{_forward_impl.1} parent=1 // pred_check_branch
      %31 = sbr.rel (0) target = $region21
    $region20: #{_forward_impl.1} parent=1 // pred_region
      _
    $region21: #{_forward_impl.1} parent=1 // pred_fallthru
      _
    // Predicated region
    $region22: #{_forward_impl.1} parent=1 // pred_check
      _
    $region23: #{_forward_impl.1} parent=1 // pred_check_branch
      %33 = sbr.rel (0) target = $region25
    $region24: #{_forward_impl.1} parent=1 // pred_region
      %s35 = ssub.s32 1024, 1024
      %36 = vsyncadd [#allocation3], %s35
      %s37 = sshll.u32 [#allocation2], 4
      %s38 = int_to_ptr.vmem [resolvable:$true] %s37
      %43 = dma.hbm_to_vmem [thread:$0]  %s5, 1024, %s38, [#allocation3], 64, 64, 4
    $region25: #{_forward_impl.1} parent=1 // pred_fallthru
      _
    // Predicated region
    $region26: #{_forward_impl.1} parent=1 // pred_check
      _
    $region27: #{_forward_impl.1} parent=1 // pred_check_branch
      %45 = sbr.rel (0) target = $region29
    $region28: #{_forward_impl.1} parent=1 // pred_region
      _
    $region29: #{_forward_impl.1} parent=1 // pred_fallthru
      _
    // Predicated region
    $region30: #{_forward_impl.1} parent=1 // pred_check
      _
    $region31: #{_forward_impl.1} parent=1 // pred_check_branch
      %47 = sbr.rel (0) target = $region33
    $region32: #{_forward_impl.1} parent=1 // pred_region
      %s49 = ssub.s32 1024, 1024
      %50 = vsyncadd [#allocation5], %s49
      %s51 = sshll.u32 [#allocation4], 4
      %s52 = int_to_ptr.vmem [resolvable:$true] %s51
      %57 = dma.hbm_to_vmem [thread:$0]  %s7, 1024, %s52, [#allocation5], 64, 64, 4
    $region33: #{_forward_impl.1} parent=1 // pred_fallthru
      _
    // Predicated region
    $region34: #{_forward_impl.1} parent=1 // pred_check
      _
    $region35: #{_forward_impl.1} parent=1 // pred_check_branch
      %59 = sbr.rel (0) target = $region37
    $region36: #{_forward_impl.1} parent=1 // pred_region
      _
    $region37: #{_forward_impl.1} parent=1 // pred_fallthru
      _
    // Predicated region
    $region38: #{_forward_impl.1} parent=1 // pred_check
      _
    $region39: #{_forward_impl.1} parent=1 // pred_check_branch
      %61 = sbr.rel (0) target = $region41
    $region40: #{_forward_impl.1} parent=1 // pred_region
      _
    $region41: #{_forward_impl.1} parent=1 // pred_fallthru
      _
    // Predicated region
    $region42: #{_forward_impl.1} parent=1 // pred_check
      _
    $region43: #{_forward_impl.1} parent=1 // pred_check_branch
      %63 = sbr.rel (0) target = $region45
    $region44: #{_forward_impl.1} parent=1 // pred_region
      _
    $region45: #{_forward_impl.1} parent=1 // pred_fallthru
      _
    // Predicated region
    $region46: #{_forward_impl.1} parent=1 // pred_check
      _
    $region47: #{_forward_impl.1} parent=1 // pred_check_branch
      %65 = sbr.rel (0) target = $region49
    $region48: #{_forward_impl.1} parent=1 // pred_region
      _
    $region49: #{_forward_impl.1} parent=1 // pred_fallthru
      _
    // Predicated region
    $region50: #{_forward_impl.1} parent=1 // pred_check
      _
    $region51: #{_forward_impl.1} parent=1 // pred_check_branch
      %67 = sbr.rel (0) target = $region53
    $region52: #{_forward_impl.1} parent=1 // pred_region
      _
    $region53: #{_forward_impl.1} parent=1 // pred_fallthru
      _
    // Predicated region
    $region54: #{_forward_impl.1} parent=1 // pred_check
      _
    $region55: #{_forward_impl.1} parent=1 // pred_check_branch
      %69 = sbr.rel (0) target = $region57
    $region56: #{_forward_impl.1} parent=1 // pred_region
      %70 = dma.done [#allocation3], 1024
    $region57: #{_forward_impl.1} parent=1 // pred_fallthru
      _
    // Predicated region
    $region58: #{_forward_impl.1} parent=1 // pred_check
      _
    $region59: #{_forward_impl.1} parent=1 // pred_check_branch
      %72 = sbr.rel (0) target = $region61
    $region60: #{_forward_impl.1} parent=1 // pred_region
      %73 = dma.done [#allocation5], 1024
    $region61: #{_forward_impl.1} parent=1 // pred_fallthru
      _
    %v75 = vld [vmem:[%s0] sm:$0xf]
    %v76 = vld [vmem:[%s0 + $0x4] sm:$0xf]
    %v77 = vld [vmem:[%s0 + $0x8] sm:$0xf]
    %v78 = vld [vmem:[%s0 + $0xc] sm:$0xf]
    %v79 = vld [vmem:[%s0 + $0x10] sm:$0xf]
    %v80 = vld [vmem:[%s0 + $0x14] sm:$0xf]
    %v81 = vld [vmem:[%s0 + $0x18] sm:$0xf]
    %v82 = vld [vmem:[%s0 + $0x1c] sm:$0xf]
    %v83 = vld [vmem:[%s0 + $0x20] sm:$0xf]
    %v84 = vld [vmem:[%s0 + $0x24] sm:$0xf]
    %v85 = vld [vmem:[%s0 + $0x28] sm:$0xf]
    %v86 = vld [vmem:[%s0 + $0x2c] sm:$0xf]
    %v87 = vld [vmem:[%s0 + $0x30] sm:$0xf]
    %v88 = vld [vmem:[%s0 + $0x34] sm:$0xf]
    %v89 = vld [vmem:[%s0 + $0x38] sm:$0xf]
    %v90 = vld [vmem:[%s0 + $0x3c] sm:$0xf]
    %v91 = vld [vmem:[%s0 + $0x40] sm:$0xf]
    %v92 = vld [vmem:[%s0 + $0x44] sm:$0xf]
    %v93 = vld [vmem:[%s0 + $0x48] sm:$0xf]
    %v94 = vld [vmem:[%s0 + $0x4c] sm:$0xf]
    %v95 = vld [vmem:[%s0 + $0x50] sm:$0xf]
    %v96 = vld [vmem:[%s0 + $0x54] sm:$0xf]
    %v97 = vld [vmem:[%s0 + $0x58] sm:$0xf]
    %v98 = vld [vmem:[%s0 + $0x5c] sm:$0xf]
    %v99 = vld [vmem:[%s0 + $0x60] sm:$0xf]
    %v100 = vld [vmem:[%s0 + $0x64] sm:$0xf]
    %v101 = vld [vmem:[%s0 + $0x68] sm:$0xf]
    %v102 = vld [vmem:[%s0 + $0x6c] sm:$0xf]
    %v103 = vld [vmem:[%s0 + $0x70] sm:$0xf]
    %v104 = vld [vmem:[%s0 + $0x74] sm:$0xf]
    %v105 = vld [vmem:[%s0 + $0x78] sm:$0xf]
    %v106 = vld [vmem:[%s0 + $0x7c] sm:$0xf]
    %v107 = vld [vmem:[%s1] sm:$0xff]
    %v108 = vld [vmem:[%s1 + $0x8] sm:$0xff]
    %v109 = vld [vmem:[%s1 + $0x10] sm:$0xff]
    %v110 = vld [vmem:[%s1 + $0x18] sm:$0xff]
    %v111 = vld [vmem:[%s1 + $0x20] sm:$0xff]
    %v112 = vld [vmem:[%s1 + $0x28] sm:$0xff]
    %v113 = vld [vmem:[%s1 + $0x30] sm:$0xff]
    %v114 = vld [vmem:[%s1 + $0x38] sm:$0xff]
    %v115 = vld [vmem:[%s1 + $0x40] sm:$0xff]
    %v116 = vld [vmem:[%s1 + $0x48] sm:$0xff]
    %v117 = vld [vmem:[%s1 + $0x50] sm:$0xff]
    %v118 = vld [vmem:[%s1 + $0x58] sm:$0xff]
    %v119 = vld [vmem:[%s1 + $0x60] sm:$0xff]
    %v120 = vld [vmem:[%s1 + $0x68] sm:$0xff]
    %v121 = vld [vmem:[%s1 + $0x70] sm:$0xff]
    %v122 = vld [vmem:[%s1 + $0x78] sm:$0xff]
    %v123 = vld [vmem:[%s2] sm:$0x3]
    %v125 = vlaneseq
    %v126 = vshrl.u32 %v125, 7
    %v127 = vsub.s32 0, %v126
    %v128 = vrot.slane %v123, %v127
    %v129 = vlaneseq
    %v130 = vshrl.u32 %v129, 7
    %v131 = vsub.s32 1, %v130
    %v132 = vrot.slane %v123, %v131
    %v167 = vunpack.c.l.b16 %v75
    %v168 = vunpack.c.l.b16 %v76
    %v169 = vunpack.c.l.b16 %v77
    %v170 = vunpack.c.l.b16 %v78
    %v171 = vunpack.c.l.b16 %v79
    %v172 = vunpack.c.l.b16 %v80
    %v173 = vunpack.c.l.b16 %v81
    %v174 = vunpack.c.l.b16 %v82
    %v175 = vunpack.c.l.b16 %v83
    %v176 = vunpack.c.l.b16 %v84
    %v177 = vunpack.c.l.b16 %v85
    %v178 = vunpack.c.l.b16 %v86
    %v179 = vunpack.c.l.b16 %v87
    %v180 = vunpack.c.l.b16 %v88
    %v181 = vunpack.c.l.b16 %v89
    %v182 = vunpack.c.l.b16 %v90
    %v183 = vunpack.c.l.b16 %v91
    %v184 = vunpack.c.l.b16 %v92
    %v185 = vunpack.c.l.b16 %v93
    %v186 = vunpack.c.l.b16 %v94
    %v187 = vunpack.c.l.b16 %v95
    %v188 = vunpack.c.l.b16 %v96
    %v189 = vunpack.c.l.b16 %v97
    %v190 = vunpack.c.l.b16 %v98
    %v191 = vunpack.c.l.b16 %v99
    %v192 = vunpack.c.l.b16 %v100
    %v193 = vunpack.c.l.b16 %v101
    %v194 = vunpack.c.l.b16 %v102
    %v195 = vunpack.c.l.b16 %v103
    %v196 = vunpack.c.l.b16 %v104
    %v197 = vunpack.c.l.b16 %v105
    %v198 = vunpack.c.l.b16 %v106
    %v199 = vpack.c.b16 %v168, %v167
    %v200 = vpack.c.b16 %v170, %v169
    %v201 = vpack.c.b16 %v172, %v171
    %v202 = vpack.c.b16 %v174, %v173
    %v203 = vpack.c.b16 %v176, %v175
    %v204 = vpack.c.b16 %v178, %v177
    %v205 = vpack.c.b16 %v180, %v179
    %v206 = vpack.c.b16 %v182, %v181
    %v207 = vpack.c.b16 %v184, %v183
    %v208 = vpack.c.b16 %v186, %v185
    %v209 = vpack.c.b16 %v188, %v187
    %v210 = vpack.c.b16 %v190, %v189
    %v211 = vpack.c.b16 %v192, %v191
    %v212 = vpack.c.b16 %v194, %v193
    %v213 = vpack.c.b16 %v196, %v195
    %v214 = vpack.c.b16 %v198, %v197
    %v247 = vunpack.c.l.b16 %v107
    %v248 = vunpack.c.h.b16 %v107
    %v249 = vunpack.c.l.b16 %v108
    %v250 = vunpack.c.h.b16 %v108
    %v251 = vunpack.c.l.b16 %v109
    %v252 = vunpack.c.h.b16 %v109
    %v253 = vunpack.c.l.b16 %v110
    %v254 = vunpack.c.h.b16 %v110
    %v255 = vunpack.c.l.b16 %v111
    %v256 = vunpack.c.h.b16 %v111
    %v257 = vunpack.c.l.b16 %v112
    %v258 = vunpack.c.h.b16 %v112
    %v259 = vunpack.c.l.b16 %v113
    %v260 = vunpack.c.h.b16 %v113
    %v261 = vunpack.c.l.b16 %v114
    %v262 = vunpack.c.h.b16 %v114
    %v263 = vunpack.c.l.b16 %v115
    %v264 = vunpack.c.h.b16 %v115
    %v265 = vunpack.c.l.b16 %v116
    %v266 = vunpack.c.h.b16 %v116
    %v267 = vunpack.c.l.b16 %v117
    %v268 = vunpack.c.h.b16 %v117
    %v269 = vunpack.c.l.b16 %v118
    %v270 = vunpack.c.h.b16 %v118
    %v271 = vunpack.c.l.b16 %v119
    %v272 = vunpack.c.h.b16 %v119
    %v273 = vunpack.c.l.b16 %v120
    %v274 = vunpack.c.h.b16 %v120
    %v275 = vunpack.c.l.b16 %v121
    %v276 = vunpack.c.h.b16 %v121
    %v277 = vunpack.c.l.b16 %v122
    %v278 = vunpack.c.h.b16 %v122
    %v279 = vpack.c.b16 %v249, %v247
    %v280 = vpack.c.b16 %v250, %v248
    %v281 = vpack.c.b16 %v253, %v251
    %v282 = vpack.c.b16 %v254, %v252
    %v283 = vpack.c.b16 %v257, %v255
    %v284 = vpack.c.b16 %v258, %v256
    %v285 = vpack.c.b16 %v261, %v259
    %v286 = vpack.c.b16 %v262, %v260
    %v287 = vpack.c.b16 %v265, %v263
    %v288 = vpack.c.b16 %v266, %v264
    %v289 = vpack.c.b16 %v269, %v267
    %v290 = vpack.c.b16 %v270, %v268
    %v291 = vpack.c.b16 %v273, %v271
    %v292 = vpack.c.b16 %v274, %v272
    %v293 = vpack.c.b16 %v277, %v275
    %v294 = vpack.c.b16 %v278, %v276
    %311 = vmatprep.subr.bf16.mxu0 %v280
    %312 = vmatpush1.bf16.msra.mxu0 %v279
    %313 = vmatprep.subr.bf16.mxu0 %v282
    %314 = vmatpush1.bf16.msra.mxu0 %v281
    %315 = vmatprep.subr.bf16.mxu0 %v284
    %316 = vmatpush1.bf16.msra.mxu0 %v283
    %317 = vmatprep.subr.bf16.mxu0 %v286
    %318 = vmatpush1.bf16.msra.mxu0 %v285
    %319 = vmatprep.subr.bf16.mxu0 %v288
    %320 = vmatpush1.bf16.msra.mxu0 %v287
    %321 = vmatprep.subr.bf16.mxu0 %v290
    %322 = vmatpush1.bf16.msra.mxu0 %v289
    %323 = vmatprep.subr.bf16.mxu0 %v292
    %324 = vmatpush1.bf16.msra.mxu0 %v291
    %325 = vmatprep.subr.bf16.mxu0 %v294
    %326 = vmatpush1.bf16.msra.mxu0 %v293
    %327 = vmatprep.subr.bf16.mxu0 0
    %328 = vmatpush1.bf16.msra.mxu0 0
    %329 = vmatprep.subr.bf16.mxu0 0
    %330 = vmatpush1.bf16.msra.mxu0 0
    %331 = vmatprep.subr.bf16.mxu0 0
    %332 = vmatpush1.bf16.msra.mxu0 0
    %333 = vmatprep.subr.bf16.mxu0 0
    %334 = vmatpush1.bf16.msra.mxu0 0
    %335 = vmatprep.subr.bf16.mxu0 0
    %336 = vmatpush1.bf16.msra.mxu0 0
    %337 = vmatprep.subr.bf16.mxu0 0
    %338 = vmatpush1.bf16.msra.mxu0 0
    %339 = vmatprep.subr.bf16.mxu0 0
    %340 = vmatpush1.bf16.msra.mxu0 0
    %341 = vmatprep.subr.bf16.mxu0 0
    %342 = vmatpush1.bf16.msra.mxu0 0
    %343 = vmatprep.mubr.bf16.mxu0 0
    %344 = vmatmul.mubr.bf16.gmra.mrb[0].mxu0 %v199
    %v345 = vpop.f32.mrb[0].mxu0
    %v346 = vadd.f32 %v128, %v345
    %v347 = vpop.f32.mrb[0].mxu0
    %v348 = vadd.f32 %v132, %v347
    %v349 = vpop.f32.mrb[0].mxu0
    %v350 = vadd.f32 %v128, %v349
    %v351 = vpop.f32.mrb[0].mxu0
    %v352 = vadd.f32 %v132, %v351
    %353 = vmatprep.mubr.bf16.mxu0 0
    %354 = vmatmul.mubr.bf16.gmra.mrb[0].mxu0 %v200
    %v355 = vpop.f32.mrb[0].mxu0
    %v356 = vadd.f32 %v128, %v355
    %v357 = vpop.f32.mrb[0].mxu0
    %v358 = vadd.f32 %v132, %v357
    %v359 = vpop.f32.mrb[0].mxu0
    %v360 = vadd.f32 %v128, %v359
    %v361 = vpop.f32.mrb[0].mxu0
    %v362 = vadd.f32 %v132, %v361
    %363 = vmatprep.mubr.bf16.mxu0 0
    %364 = vmatmul.mubr.bf16.gmra.mrb[0].mxu0 %v201
    %v365 = vpop.f32.mrb[0].mxu0
    %v366 = vadd.f32 %v128, %v365
    %v367 = vpop.f32.mrb[0].mxu0
    %v368 = vadd.f32 %v132, %v367
    %v369 = vpop.f32.mrb[0].mxu0
    %v370 = vadd.f32 %v128, %v369
    %v371 = vpop.f32.mrb[0].mxu0
    %v372 = vadd.f32 %v132, %v371
    %373 = vmatprep.mubr.bf16.mxu0 0
    %374 = vmatmul.mubr.bf16.gmra.mrb[0].mxu0 %v202
    %v375 = vpop.f32.mrb[0].mxu0
    %v376 = vadd.f32 %v128, %v375
    %v377 = vpop.f32.mrb[0].mxu0
    %v378 = vadd.f32 %v132, %v377
    %v379 = vpop.f32.mrb[0].mxu0
    %v380 = vadd.f32 %v128, %v379
    %v381 = vpop.f32.mrb[0].mxu0
    %v382 = vadd.f32 %v132, %v381
    %383 = vmatprep.mubr.bf16.mxu0 0
    %384 = vmatmul.mubr.bf16.gmra.mrb[0].mxu0 %v203
    %v385 = vpop.f32.mrb[0].mxu0
    %v386 = vadd.f32 %v128, %v385
    %v387 = vpop.f32.mrb[0].mxu0
    %v388 = vadd.f32 %v132, %v387
    %v389 = vpop.f32.mrb[0].mxu0
    %v390 = vadd.f32 %v128, %v389
    %v391 = vpop.f32.mrb[0].mxu0
    %v392 = vadd.f32 %v132, %v391
    %393 = vmatprep.mubr.bf16.mxu0 0
    %394 = vmatmul.mubr.bf16.gmra.mrb[0].mxu0 %v204
    %v395 = vpop.f32.mrb[0].mxu0
    %v396 = vadd.f32 %v128, %v395
    %v397 = vpop.f32.mrb[0].mxu0
    %v398 = vadd.f32 %v132, %v397
    %v399 = vpop.f32.mrb[0].mxu0
    %v400 = vadd.f32 %v128, %v399
    %v401 = vpop.f32.mrb[0].mxu0
    %v402 = vadd.f32 %v132, %v401
    %403 = vmatprep.mubr.bf16.mxu0 0
    %404 = vmatmul.mubr.bf16.gmra.mrb[0].mxu0 %v205
    %v405 = vpop.f32.mrb[0].mxu0
    %v406 = vadd.f32 %v128, %v405
    %v407 = vpop.f32.mrb[0].mxu0
    %v408 = vadd.f32 %v132, %v407
    %v409 = vpop.f32.mrb[0].mxu0
    %v410 = vadd.f32 %v128, %v409
    %v411 = vpop.f32.mrb[0].mxu0
    %v412 = vadd.f32 %v132, %v411
    %413 = vmatprep.mubr.bf16.mxu0 0
    %414 = vmatmul.mubr.bf16.gmra.mrb[0].mxu0 %v206
    %v415 = vpop.f32.mrb[0].mxu0
    %v416 = vadd.f32 %v128, %v415
    %v417 = vpop.f32.mrb[0].mxu0
    %v418 = vadd.f32 %v132, %v417
    %v419 = vpop.f32.mrb[0].mxu0
    %v420 = vadd.f32 %v128, %v419
    %v421 = vpop.f32.mrb[0].mxu0
    %v422 = vadd.f32 %v132, %v421
    %423 = vmatprep.mubr.bf16.mxu0 0
    %424 = vmatmul.mubr.bf16.gmra.mrb[0].mxu0 %v207
    %v425 = vpop.f32.mrb[0].mxu0
    %v426 = vadd.f32 %v128, %v425
    %v427 = vpop.f32.mrb[0].mxu0
    %v428 = vadd.f32 %v132, %v427
    %v429 = vpop.f32.mrb[0].mxu0
    %v430 = vadd.f32 %v128, %v429
    %v431 = vpop.f32.mrb[0].mxu0
    %v432 = vadd.f32 %v132, %v431
    %433 = vmatprep.mubr.bf16.mxu0 0
    %434 = vmatmul.mubr.bf16.gmra.mrb[0].mxu0 %v208
    %v435 = vpop.f32.mrb[0].mxu0
    %v436 = vadd.f32 %v128, %v435
    %v437 = vpop.f32.mrb[0].mxu0
    %v438 = vadd.f32 %v132, %v437
    %v439 = vpop.f32.mrb[0].mxu0
    %v440 = vadd.f32 %v128, %v439
    %v441 = vpop.f32.mrb[0].mxu0
    %v442 = vadd.f32 %v132, %v441
    %443 = vmatprep.mubr.bf16.mxu0 0
    %444 = vmatmul.mubr.bf16.gmra.mrb[0].mxu0 %v209
    %v445 = vpop.f32.mrb[0].mxu0
    %v446 = vadd.f32 %v128, %v445
    %v447 = vpop.f32.mrb[0].mxu0
    %v448 = vadd.f32 %v132, %v447
    %v449 = vpop.f32.mrb[0].mxu0
    %v450 = vadd.f32 %v128, %v449
    %v451 = vpop.f32.mrb[0].mxu0
    %v452 = vadd.f32 %v132, %v451
    %453 = vmatprep.mubr.bf16.mxu0 0
    %454 = vmatmul.mubr.bf16.gmra.mrb[0].mxu0 %v210
    %v455 = vpop.f32.mrb[0].mxu0
    %v456 = vadd.f32 %v128, %v455
    %v457 = vpop.f32.mrb[0].mxu0
    %v458 = vadd.f32 %v132, %v457
    %v459 = vpop.f32.mrb[0].mxu0
    %v460 = vadd.f32 %v128, %v459
    %v461 = vpop.f32.mrb[0].mxu0
    %v462 = vadd.f32 %v132, %v461
    %463 = vmatprep.mubr.bf16.mxu0 0
    %464 = vmatmul.mubr.bf16.gmra.mrb[0].mxu0 %v211
    %v465 = vpop.f32.mrb[0].mxu0
    %v466 = vadd.f32 %v128, %v465
    %v467 = vpop.f32.mrb[0].mxu0
    %v468 = vadd.f32 %v132, %v467
    %v469 = vpop.f32.mrb[0].mxu0
    %v470 = vadd.f32 %v128, %v469
    %v471 = vpop.f32.mrb[0].mxu0
    %v472 = vadd.f32 %v132, %v471
    %473 = vmatprep.mubr.bf16.mxu0 0
    %474 = vmatmul.mubr.bf16.gmra.mrb[0].mxu0 %v212
    %v475 = vpop.f32.mrb[0].mxu0
    %v476 = vadd.f32 %v128, %v475
    %v477 = vpop.f32.mrb[0].mxu0
    %v478 = vadd.f32 %v132, %v477
    %v479 = vpop.f32.mrb[0].mxu0
    %v480 = vadd.f32 %v128, %v479
    %v481 = vpop.f32.mrb[0].mxu0
    %v482 = vadd.f32 %v132, %v481
    %483 = vmatprep.mubr.bf16.mxu0 0
    %484 = vmatmul.mubr.bf16.gmra.mrb[0].mxu0 %v213
    %v485 = vpop.f32.mrb[0].mxu0
    %v486 = vadd.f32 %v128, %v485
    %v487 = vpop.f32.mrb[0].mxu0
    %v488 = vadd.f32 %v132, %v487
    %v489 = vpop.f32.mrb[0].mxu0
    %v490 = vadd.f32 %v128, %v489
    %v491 = vpop.f32.mrb[0].mxu0
    %v492 = vadd.f32 %v132, %v491
    %493 = vmatprep.mubr.bf16.mxu0 0
    %494 = vmatmul.mubr.bf16.gmra.mrb[0].mxu0 %v214
    %v495 = vpop.f32.mrb[0].mxu0
    %v496 = vadd.f32 %v128, %v495
    %v497 = vpop.f32.mrb[0].mxu0
    %v498 = vadd.f32 %v132, %v497
    %v499 = vpop.f32.mrb[0].mxu0
    %v500 = vadd.f32 %v128, %v499
    %v501 = vpop.f32.mrb[0].mxu0
    %v502 = vadd.f32 %v132, %v501
    %503 = vdwg.mxu0
    %v504 = vmax.f32 %v346, 0.0
    %v505 = vmax.f32 %v348, 0.0
    %v506 = vmax.f32 %v350, 0.0
    %v507 = vmax.f32 %v352, 0.0
    %v508 = vmax.f32 %v356, 0.0
    %v509 = vmax.f32 %v358, 0.0
    %v510 = vmax.f32 %v360, 0.0
    %v511 = vmax.f32 %v362, 0.0
    %v512 = vmax.f32 %v366, 0.0
    %v513 = vmax.f32 %v368, 0.0
    %v514 = vmax.f32 %v370, 0.0
    %v515 = vmax.f32 %v372, 0.0
    %v516 = vmax.f32 %v376, 0.0
    %v517 = vmax.f32 %v378, 0.0
    %v518 = vmax.f32 %v380, 0.0
    %v519 = vmax.f32 %v382, 0.0
    %v520 = vmax.f32 %v386, 0.0
    %v521 = vmax.f32 %v388, 0.0
    %v522 = vmax.f32 %v390, 0.0
    %v523 = vmax.f32 %v392, 0.0
    %v524 = vmax.f32 %v396, 0.0
    %v525 = vmax.f32 %v398, 0.0
    %v526 = vmax.f32 %v400, 0.0
    %v527 = vmax.f32 %v402, 0.0
    %v528 = vmax.f32 %v406, 0.0
    %v529 = vmax.f32 %v408, 0.0
    %v530 = vmax.f32 %v410, 0.0
    %v531 = vmax.f32 %v412, 0.0
    %v532 = vmax.f32 %v416, 0.0
    %v533 = vmax.f32 %v418, 0.0
    %v534 = vmax.f32 %v420, 0.0
    %v535 = vmax.f32 %v422, 0.0
    %v536 = vmax.f32 %v426, 0.0
    %v537 = vmax.f32 %v428, 0.0
    %v538 = vmax.f32 %v430, 0.0
    %v539 = vmax.f32 %v432, 0.0
    %v540 = vmax.f32 %v436, 0.0
    %v541 = vmax.f32 %v438, 0.0
    %v542 = vmax.f32 %v440, 0.0
    %v543 = vmax.f32 %v442, 0.0
    %v544 = vmax.f32 %v446, 0.0
    %v545 = vmax.f32 %v448, 0.0
    %v546 = vmax.f32 %v450, 0.0
    %v547 = vmax.f32 %v452, 0.0
    %v548 = vmax.f32 %v456, 0.0
    %v549 = vmax.f32 %v458, 0.0
    %v550 = vmax.f32 %v460, 0.0
    %v551 = vmax.f32 %v462, 0.0
    %v552 = vmax.f32 %v466, 0.0
    %v553 = vmax.f32 %v468, 0.0
    %v554 = vmax.f32 %v470, 0.0
    %v555 = vmax.f32 %v472, 0.0
    %v556 = vmax.f32 %v476, 0.0
    %v557 = vmax.f32 %v478, 0.0
    %v558 = vmax.f32 %v480, 0.0
    %v559 = vmax.f32 %v482, 0.0
    %v560 = vmax.f32 %v486, 0.0
    %v561 = vmax.f32 %v488, 0.0
    %v562 = vmax.f32 %v490, 0.0
    %v563 = vmax.f32 %v492, 0.0
    %v564 = vmax.f32 %v496, 0.0
    %v565 = vmax.f32 %v498, 0.0
    %v566 = vmax.f32 %v500, 0.0
    %v567 = vmax.f32 %v502, 0.0
    %v568 = vpack.c.bf16 %v506, %v504
    %v569 = vpack.c.bf16 %v507, %v505
    %v570 = vpack.c.bf16 %v510, %v508
    %v571 = vpack.c.bf16 %v511, %v509
    %v572 = vpack.c.bf16 %v514, %v512
    %v573 = vpack.c.bf16 %v515, %v513
    %v574 = vpack.c.bf16 %v518, %v516
    %v575 = vpack.c.bf16 %v519, %v517
    %v576 = vpack.c.bf16 %v522, %v520
    %v577 = vpack.c.bf16 %v523, %v521
    %v578 = vpack.c.bf16 %v526, %v524
    %v579 = vpack.c.bf16 %v527, %v525
    %v580 = vpack.c.bf16 %v530, %v528
    %v581 = vpack.c.bf16 %v531, %v529
    %v582 = vpack.c.bf16 %v534, %v532
    %v583 = vpack.c.bf16 %v535, %v533
    %v584 = vpack.c.bf16 %v538, %v536
    %v585 = vpack.c.bf16 %v539, %v537
    %v586 = vpack.c.bf16 %v542, %v540
    %v587 = vpack.c.bf16 %v543, %v541
    %v588 = vpack.c.bf16 %v546, %v544
    %v589 = vpack.c.bf16 %v547, %v545
    %v590 = vpack.c.bf16 %v550, %v548
    %v591 = vpack.c.bf16 %v551, %v549
    %v592 = vpack.c.bf16 %v554, %v552
    %v593 = vpack.c.bf16 %v555, %v553
    %v594 = vpack.c.bf16 %v558, %v556
    %v595 = vpack.c.bf16 %v559, %v557
    %v596 = vpack.c.bf16 %v562, %v560
    %v597 = vpack.c.bf16 %v563, %v561
    %v598 = vpack.c.bf16 %v566, %v564
    %v599 = vpack.c.bf16 %v567, %v565
    %v600 = vld [vmem:[%s3] sm:$0xf]
    %v601 = vld [vmem:[%s3 + $0x4] sm:$0xf]
    %v602 = vld [vmem:[%s3 + $0x8] sm:$0xf]
    %v603 = vld [vmem:[%s3 + $0xc] sm:$0xf]
    %v604 = vld [vmem:[%s3 + $0x10] sm:$0xf]
    %v605 = vld [vmem:[%s3 + $0x14] sm:$0xf]
    %v606 = vld [vmem:[%s3 + $0x18] sm:$0xf]
    %v607 = vld [vmem:[%s3 + $0x1c] sm:$0xf]
    %v608 = vld [vmem:[%s3 + $0x20] sm:$0xf]
    %v609 = vld [vmem:[%s3 + $0x24] sm:$0xf]
    %v610 = vld [vmem:[%s3 + $0x28] sm:$0xf]
    %v611 = vld [vmem:[%s3 + $0x2c] sm:$0xf]
    %v612 = vld [vmem:[%s3 + $0x30] sm:$0xf]
    %v613 = vld [vmem:[%s3 + $0x34] sm:$0xf]
    %v614 = vld [vmem:[%s3 + $0x38] sm:$0xf]
    %v615 = vld [vmem:[%s3 + $0x3c] sm:$0xf]
    %v616 = vld [vmem:[%s3 + $0x40] sm:$0xf]
    %v617 = vld [vmem:[%s3 + $0x44] sm:$0xf]
    %v618 = vld [vmem:[%s3 + $0x48] sm:$0xf]
    %v619 = vld [vmem:[%s3 + $0x4c] sm:$0xf]
    %v620 = vld [vmem:[%s3 + $0x50] sm:$0xf]
    %v621 = vld [vmem:[%s3 + $0x54] sm:$0xf]
    %v622 = vld [vmem:[%s3 + $0x58] sm:$0xf]
    %v623 = vld [vmem:[%s3 + $0x5c] sm:$0xf]
    %v624 = vld [vmem:[%s3 + $0x60] sm:$0xf]
    %v625 = vld [vmem:[%s3 + $0x64] sm:$0xf]
    %v626 = vld [vmem:[%s3 + $0x68] sm:$0xf]
    %v627 = vld [vmem:[%s3 + $0x6c] sm:$0xf]
    %v628 = vld [vmem:[%s3 + $0x70] sm:$0xf]
    %v629 = vld [vmem:[%s3 + $0x74] sm:$0xf]
    %v630 = vld [vmem:[%s3 + $0x78] sm:$0xf]
    %v631 = vld [vmem:[%s3 + $0x7c] sm:$0xf]
    %v632 = vld [vmem:[%s4] sm:$0x1]
    %v634 = vlaneseq
    %v635 = vshrl.u32 %v634, 7
    %v636 = vsub.s32 0, %v635
    %v637 = vrot.slane %v632, %v636
    %v671 = vunpack.c.l.b16 %v600
    %v672 = vunpack.c.l.b16 %v601
    %v673 = vunpack.c.l.b16 %v602
    %v674 = vunpack.c.l.b16 %v603
    %v675 = vunpack.c.l.b16 %v604
    %v676 = vunpack.c.l.b16 %v605
    %v677 = vunpack.c.l.b16 %v606
    %v678 = vunpack.c.l.b16 %v607
    %v679 = vunpack.c.l.b16 %v608
    %v680 = vunpack.c.l.b16 %v609
    %v681 = vunpack.c.l.b16 %v610
    %v682 = vunpack.c.l.b16 %v611
    %v683 = vunpack.c.l.b16 %v612
    %v684 = vunpack.c.l.b16 %v613
    %v685 = vunpack.c.l.b16 %v614
    %v686 = vunpack.c.l.b16 %v615
    %v687 = vunpack.c.l.b16 %v616
    %v688 = vunpack.c.l.b16 %v617
    %v689 = vunpack.c.l.b16 %v618
    %v690 = vunpack.c.l.b16 %v619
    %v691 = vunpack.c.l.b16 %v620
    %v692 = vunpack.c.l.b16 %v621
    %v693 = vunpack.c.l.b16 %v622
    %v694 = vunpack.c.l.b16 %v623
    %v695 = vunpack.c.l.b16 %v624
    %v696 = vunpack.c.l.b16 %v625
    %v697 = vunpack.c.l.b16 %v626
    %v698 = vunpack.c.l.b16 %v627
    %v699 = vunpack.c.l.b16 %v628
    %v700 = vunpack.c.l.b16 %v629
    %v701 = vunpack.c.l.b16 %v630
    %v702 = vunpack.c.l.b16 %v631
    %v703 = vpack.c.b16 %v672, %v671
    %v704 = vpack.c.b16 %v674, %v673
    %v705 = vpack.c.b16 %v676, %v675
    %v706 = vpack.c.b16 %v678, %v677
    %v707 = vpack.c.b16 %v680, %v679
    %v708 = vpack.c.b16 %v682, %v681
    %v709 = vpack.c.b16 %v684, %v683
    %v710 = vpack.c.b16 %v686, %v685
    %v711 = vpack.c.b16 %v688, %v687
    %v712 = vpack.c.b16 %v690, %v689
    %v713 = vpack.c.b16 %v692, %v691
    %v714 = vpack.c.b16 %v694, %v693
    %v715 = vpack.c.b16 %v696, %v695
    %v716 = vpack.c.b16 %v698, %v697
    %v717 = vpack.c.b16 %v700, %v699
    %v718 = vpack.c.b16 %v702, %v701
    %735 = vmatprep.subr.bf16.mxu0 0
    %736 = vmatpush1.bf16.msra.mxu0 %v703
    %737 = vmatprep.subr.bf16.mxu0 0
    %738 = vmatpush1.bf16.msra.mxu0 %v704
    %739 = vmatprep.subr.bf16.mxu0 0
    %740 = vmatpush1.bf16.msra.mxu0 %v705
    %741 = vmatprep.subr.bf16.mxu0 0
    %742 = vmatpush1.bf16.msra.mxu0 %v706
    %743 = vmatprep.subr.bf16.mxu0 0
    %744 = vmatpush1.bf16.msra.mxu0 %v707
    %745 = vmatprep.subr.bf16.mxu0 0
    %746 = vmatpush1.bf16.msra.mxu0 %v708
    %747 = vmatprep.subr.bf16.mxu0 0
    %748 = vmatpush1.bf16.msra.mxu0 %v709
    %749 = vmatprep.subr.bf16.mxu0 0
    %750 = vmatpush1.bf16.msra.mxu0 %v710
    %751 = vmatprep.subr.bf16.mxu0 0
    %752 = vmatpush1.bf16.msra.mxu0 %v711
    %753 = vmatprep.subr.bf16.mxu0 0
    %754 = vmatpush1.bf16.msra.mxu0 %v712
    %755 = vmatprep.subr.bf16.mxu0 0
    %756 = vmatpush1.bf16.msra.mxu0 %v713
    %757 = vmatprep.subr.bf16.mxu0 0
    %758 = vmatpush1.bf16.msra.mxu0 %v714
    %759 = vmatprep.subr.bf16.mxu0 0
    %760 = vmatpush1.bf16.msra.mxu0 %v715
    %761 = vmatprep.subr.bf16.mxu0 0
    %762 = vmatpush1.bf16.msra.mxu0 %v716
    %763 = vmatprep.subr.bf16.mxu0 0
    %764 = vmatpush1.bf16.msra.mxu0 %v717
    %765 = vmatprep.subr.bf16.mxu0 0
    %766 = vmatpush1.bf16.msra.mxu0 %v718
    %767 = vmatprep.mubr.bf16.mxu0 %v569
    %768 = vmatmul.mubr.bf16.gmra.mrb[0].mxu0 %v568
    %v769 = vpop.f32.mrb[0].mxu0
    %v770 = vadd.f32 %v637, %v769
    %v771 = vpop.f32.mrb[0].mxu0
    %v772 = vpop.f32.mrb[0].mxu0
    %v773 = vadd.f32 %v637, %v772
    %v774 = vpop.f32.mrb[0].mxu0
    %775 = vmatprep.mubr.bf16.mxu0 %v571
    %776 = vmatmul.mubr.bf16.gmra.mrb[0].mxu0 %v570
    %v777 = vpop.f32.mrb[0].mxu0
    %v778 = vadd.f32 %v637, %v777
    %v779 = vpop.f32.mrb[0].mxu0
    %v780 = vpop.f32.mrb[0].mxu0
    %v781 = vadd.f32 %v637, %v780
    %v782 = vpop.f32.mrb[0].mxu0
    %783 = vmatprep.mubr.bf16.mxu0 %v573
    %784 = vmatmul.mubr.bf16.gmra.mrb[0].mxu0 %v572
    %v785 = vpop.f32.mrb[0].mxu0
    %v786 = vadd.f32 %v637, %v785
    %v787 = vpop.f32.mrb[0].mxu0
    %v788 = vpop.f32.mrb[0].mxu0
    %v789 = vadd.f32 %v637, %v788
    %v790 = vpop.f32.mrb[0].mxu0
    %791 = vmatprep.mubr.bf16.mxu0 %v575
    %792 = vmatmul.mubr.bf16.gmra.mrb[0].mxu0 %v574
    %v793 = vpop.f32.mrb[0].mxu0
    %v794 = vadd.f32 %v637, %v793
    %v795 = vpop.f32.mrb[0].mxu0
    %v796 = vpop.f32.mrb[0].mxu0
    %v797 = vadd.f32 %v637, %v796
    %v798 = vpop.f32.mrb[0].mxu0
    %799 = vmatprep.mubr.bf16.mxu0 %v577
    %800 = vmatmul.mubr.bf16.gmra.mrb[0].mxu0 %v576
    %v801 = vpop.f32.mrb[0].mxu0
    %v802 = vadd.f32 %v637, %v801
    %v803 = vpop.f32.mrb[0].mxu0
    %v804 = vpop.f32.mrb[0].mxu0
    %v805 = vadd.f32 %v637, %v804
    %v806 = vpop.f32.mrb[0].mxu0
    %807 = vmatprep.mubr.bf16.mxu0 %v579
    %808 = vmatmul.mubr.bf16.gmra.mrb[0].mxu0 %v578
    %v809 = vpop.f32.mrb[0].mxu0
    %v810 = vadd.f32 %v637, %v809
    %v811 = vpop.f32.mrb[0].mxu0
    %v812 = vpop.f32.mrb[0].mxu0
    %v813 = vadd.f32 %v637, %v812
    %v814 = vpop.f32.mrb[0].mxu0
    %815 = vmatprep.mubr.bf16.mxu0 %v581
    %816 = vmatmul.mubr.bf16.gmra.mrb[0].mxu0 %v580
    %v817 = vpop.f32.mrb[0].mxu0
    %v818 = vadd.f32 %v637, %v817
    %v819 = vpop.f32.mrb[0].mxu0
    %v820 = vpop.f32.mrb[0].mxu0
    %v821 = vadd.f32 %v637, %v820
    %v822 = vpop.f32.mrb[0].mxu0
    %823 = vmatprep.mubr.bf16.mxu0 %v583
    %824 = vmatmul.mubr.bf16.gmra.mrb[0].mxu0 %v582
    %v825 = vpop.f32.mrb[0].mxu0
    %v826 = vadd.f32 %v637, %v825
    %v827 = vpop.f32.mrb[0].mxu0
    %v828 = vpop.f32.mrb[0].mxu0
    %v829 = vadd.f32 %v637, %v828
    %v830 = vpop.f32.mrb[0].mxu0
    %831 = vmatprep.mubr.bf16.mxu0 %v585
    %832 = vmatmul.mubr.bf16.gmra.mrb[0].mxu0 %v584
    %v833 = vpop.f32.mrb[0].mxu0
    %v834 = vadd.f32 %v637, %v833
    %v835 = vpop.f32.mrb[0].mxu0
    %v836 = vpop.f32.mrb[0].mxu0
    %v837 = vadd.f32 %v637, %v836
    %v838 = vpop.f32.mrb[0].mxu0
    %839 = vmatprep.mubr.bf16.mxu0 %v587
    %840 = vmatmul.mubr.bf16.gmra.mrb[0].mxu0 %v586
    %v841 = vpop.f32.mrb[0].mxu0
    %v842 = vadd.f32 %v637, %v841
    %v843 = vpop.f32.mrb[0].mxu0
    %v844 = vpop.f32.mrb[0].mxu0
    %v845 = vadd.f32 %v637, %v844
    %v846 = vpop.f32.mrb[0].mxu0
    %847 = vmatprep.mubr.bf16.mxu0 %v589
    %848 = vmatmul.mubr.bf16.gmra.mrb[0].mxu0 %v588
    %v849 = vpop.f32.mrb[0].mxu0
    %v850 = vadd.f32 %v637, %v849
    %v851 = vpop.f32.mrb[0].mxu0
    %v852 = vpop.f32.mrb[0].mxu0
    %v853 = vadd.f32 %v637, %v852
    %v854 = vpop.f32.mrb[0].mxu0
    %855 = vmatprep.mubr.bf16.mxu0 %v591
    %856 = vmatmul.mubr.bf16.gmra.mrb[0].mxu0 %v590
    %v857 = vpop.f32.mrb[0].mxu0
    %v858 = vadd.f32 %v637, %v857
    %v859 = vpop.f32.mrb[0].mxu0
    %v860 = vpop.f32.mrb[0].mxu0
    %v861 = vadd.f32 %v637, %v860
    %v862 = vpop.f32.mrb[0].mxu0
    %863 = vmatprep.mubr.bf16.mxu0 %v593
    %864 = vmatmul.mubr.bf16.gmra.mrb[0].mxu0 %v592
    %v865 = vpop.f32.mrb[0].mxu0
    %v866 = vadd.f32 %v637, %v865
    %v867 = vpop.f32.mrb[0].mxu0
    %v868 = vpop.f32.mrb[0].mxu0
    %v869 = vadd.f32 %v637, %v868
    %v870 = vpop.f32.mrb[0].mxu0
    %871 = vmatprep.mubr.bf16.mxu0 %v595
    %872 = vmatmul.mubr.bf16.gmra.mrb[0].mxu0 %v594
    %v873 = vpop.f32.mrb[0].mxu0
    %v874 = vadd.f32 %v637, %v873
    %v875 = vpop.f32.mrb[0].mxu0
    %v876 = vpop.f32.mrb[0].mxu0
    %v877 = vadd.f32 %v637, %v876
    %v878 = vpop.f32.mrb[0].mxu0
    %879 = vmatprep.mubr.bf16.mxu0 %v597
    %880 = vmatmul.mubr.bf16.gmra.mrb[0].mxu0 %v596
    %v881 = vpop.f32.mrb[0].mxu0
    %v882 = vadd.f32 %v637, %v881
    %v883 = vpop.f32.mrb[0].mxu0
    %v884 = vpop.f32.mrb[0].mxu0
    %v885 = vadd.f32 %v637, %v884
    %v886 = vpop.f32.mrb[0].mxu0
    %887 = vmatprep.mubr.bf16.mxu0 %v599
    %888 = vmatmul.mubr.bf16.gmra.mrb[0].mxu0 %v598
    %v889 = vpop.f32.mrb[0].mxu0
    %v890 = vadd.f32 %v637, %v889
    %v891 = vpop.f32.mrb[0].mxu0
    %v892 = vpop.f32.mrb[0].mxu0
    %v893 = vadd.f32 %v637, %v892
    %v894 = vpop.f32.mrb[0].mxu0
    %895 = vdwg.mxu0
    %v896 = vpack.c.bf16 %v773, %v770
    %v897 = vpack.c.bf16 %v781, %v778
    %v898 = vpack.c.bf16 %v789, %v786
    %v899 = vpack.c.bf16 %v797, %v794
    %v900 = vpack.c.bf16 %v805, %v802
    %v901 = vpack.c.bf16 %v813, %v810
    %v902 = vpack.c.bf16 %v821, %v818
    %v903 = vpack.c.bf16 %v829, %v826
    %v904 = vpack.c.bf16 %v837, %v834
    %v905 = vpack.c.bf16 %v845, %v842
    %v906 = vpack.c.bf16 %v853, %v850
    %v907 = vpack.c.bf16 %v861, %v858
    %v908 = vpack.c.bf16 %v869, %v866
    %v909 = vpack.c.bf16 %v877, %v874
    %v910 = vpack.c.bf16 %v885, %v882
    %v911 = vpack.c.bf16 %v893, %v890
    %v912 = vld [vmem:[#allocation2] sm:$0xf]
    %v913 = vld [vmem:[#allocation2 + $0x4] sm:$0xf]
    %v914 = vld [vmem:[#allocation2 + $0x8] sm:$0xf]
    %v915 = vld [vmem:[#allocation2 + $0xc] sm:$0xf]
    %v916 = vld [vmem:[#allocation2 + $0x10] sm:$0xf]
    %v917 = vld [vmem:[#allocation2 + $0x14] sm:$0xf]
    %v918 = vld [vmem:[#allocation2 + $0x18] sm:$0xf]
    %v919 = vld [vmem:[#allocation2 + $0x1c] sm:$0xf]
    %v920 = vld [vmem:[#allocation2 + $0x20] sm:$0xf]
    %v921 = vld [vmem:[#allocation2 + $0x24] sm:$0xf]
    %v922 = vld [vmem:[#allocation2 + $0x28] sm:$0xf]
    %v923 = vld [vmem:[#allocation2 + $0x2c] sm:$0xf]
    %v924 = vld [vmem:[#allocation2 + $0x30] sm:$0xf]
    %v925 = vld [vmem:[#allocation2 + $0x34] sm:$0xf]
    %v926 = vld [vmem:[#allocation2 + $0x38] sm:$0xf]
    %v927 = vld [vmem:[#allocation2 + $0x3c] sm:$0xf]
    %v928 = vld [vmem:[%s6] sm:$0x1]
    %v930 = vlaneseq
    %v931 = vshrl.u32 %v930, 7
    %v932 = vsub.s32 0, %v931
    %v933 = vrot.slane %v928, %v932
    %v951 = vunpack.c.l.b16 %v912
    %v952 = vunpack.c.l.b16 %v913
    %v953 = vunpack.c.l.b16 %v914
    %v954 = vunpack.c.l.b16 %v915
    %v955 = vunpack.c.l.b16 %v916
    %v956 = vunpack.c.l.b16 %v917
    %v957 = vunpack.c.l.b16 %v918
    %v958 = vunpack.c.l.b16 %v919
    %v959 = vunpack.c.l.b16 %v920
    %v960 = vunpack.c.l.b16 %v921
    %v961 = vunpack.c.l.b16 %v922
    %v962 = vunpack.c.l.b16 %v923
    %v963 = vunpack.c.l.b16 %v924
    %v964 = vunpack.c.l.b16 %v925
    %v965 = vunpack.c.l.b16 %v926
    %v966 = vunpack.c.l.b16 %v927
    %v967 = vpack.c.b16 %v952, %v951
    %v968 = vpack.c.b16 %v954, %v953
    %v969 = vpack.c.b16 %v956, %v955
    %v970 = vpack.c.b16 %v958, %v957
    %v971 = vpack.c.b16 %v960, %v959
    %v972 = vpack.c.b16 %v962, %v961
    %v973 = vpack.c.b16 %v964, %v963
    %v974 = vpack.c.b16 %v966, %v965
    %983 = vmatprep.subr.bf16.mxu0 0
    %984 = vmatpush1.bf16.msra.mxu0 %v967
    %985 = vmatprep.subr.bf16.mxu0 0
    %986 = vmatpush1.bf16.msra.mxu0 %v968
    %987 = vmatprep.subr.bf16.mxu0 0
    %988 = vmatpush1.bf16.msra.mxu0 %v969
    %989 = vmatprep.subr.bf16.mxu0 0
    %990 = vmatpush1.bf16.msra.mxu0 %v970
    %991 = vmatprep.subr.bf16.mxu0 0
    %992 = vmatpush1.bf16.msra.mxu0 %v971
    %993 = vmatprep.subr.bf16.mxu0 0
    %994 = vmatpush1.bf16.msra.mxu0 %v972
    %995 = vmatprep.subr.bf16.mxu0 0
    %996 = vmatpush1.bf16.msra.mxu0 %v973
    %997 = vmatprep.subr.bf16.mxu0 0
    %998 = vmatpush1.bf16.msra.mxu0 %v974
    %999 = vmatprep.subr.bf16.mxu0 0
    %1000 = vmatpush1.bf16.msra.mxu0 0
    %1001 = vmatprep.subr.bf16.mxu0 0
    %1002 = vmatpush1.bf16.msra.mxu0 0
    %1003 = vmatprep.subr.bf16.mxu0 0
    %1004 = vmatpush1.bf16.msra.mxu0 0
    %1005 = vmatprep.subr.bf16.mxu0 0
    %1006 = vmatpush1.bf16.msra.mxu0 0
    %1007 = vmatprep.subr.bf16.mxu0 0
    %1008 = vmatpush1.bf16.msra.mxu0 0
    %1009 = vmatprep.subr.bf16.mxu0 0
    %1010 = vmatpush1.bf16.msra.mxu0 0
    %1011 = vmatprep.subr.bf16.mxu0 0
    %1012 = vmatpush1.bf16.msra.mxu0 0
    %1013 = vmatprep.subr.bf16.mxu0 0
    %1014 = vmatpush1.bf16.msra.mxu0 0
    %1015 = vmatprep.mubr.bf16.mxu0 0
    %1016 = vmatmul.mubr.bf16.gmra.mrb[0].mxu0 %v896
    %v1017 = vpop.f32.mrb[0].mxu0
    %v1018 = vadd.f32 %v933, %v1017
    %v1019 = vpop.f32.mrb[0].mxu0
    %v1020 = vpop.f32.mrb[0].mxu0
    %v1021 = vadd.f32 %v933, %v1020
    %v1022 = vpop.f32.mrb[0].mxu0
    %1023 = vmatprep.mubr.bf16.mxu0 0
    %1024 = vmatmul.mubr.bf16.gmra.mrb[0].mxu0 %v897
    %v1025 = vpop.f32.mrb[0].mxu0
    %v1026 = vadd.f32 %v933, %v1025
    %v1027 = vpop.f32.mrb[0].mxu0
    %v1028 = vpop.f32.mrb[0].mxu0
    %v1029 = vadd.f32 %v933, %v1028
    %v1030 = vpop.f32.mrb[0].mxu0
    %1031 = vmatprep.mubr.bf16.mxu0 0
    %1032 = vmatmul.mubr.bf16.gmra.mrb[0].mxu0 %v898
    %v1033 = vpop.f32.mrb[0].mxu0
    %v1034 = vadd.f32 %v933, %v1033
    %v1035 = vpop.f32.mrb[0].mxu0
    %v1036 = vpop.f32.mrb[0].mxu0
    %v1037 = vadd.f32 %v933, %v1036
    %v1038 = vpop.f32.mrb[0].mxu0
    %1039 = vmatprep.mubr.bf16.mxu0 0
    %1040 = vmatmul.mubr.bf16.gmra.mrb[0].mxu0 %v899
    %v1041 = vpop.f32.mrb[0].mxu0
    %v1042 = vadd.f32 %v933, %v1041
    %v1043 = vpop.f32.mrb[0].mxu0
    %v1044 = vpop.f32.mrb[0].mxu0
    %v1045 = vadd.f32 %v933, %v1044
    %v1046 = vpop.f32.mrb[0].mxu0
    %1047 = vmatprep.mubr.bf16.mxu0 0
    %1048 = vmatmul.mubr.bf16.gmra.mrb[0].mxu0 %v900
    %v1049 = vpop.f32.mrb[0].mxu0
    %v1050 = vadd.f32 %v933, %v1049
    %v1051 = vpop.f32.mrb[0].mxu0
    %v1052 = vpop.f32.mrb[0].mxu0
    %v1053 = vadd.f32 %v933, %v1052
    %v1054 = vpop.f32.mrb[0].mxu0
    %1055 = vmatprep.mubr.bf16.mxu0 0
    %1056 = vmatmul.mubr.bf16.gmra.mrb[0].mxu0 %v901
    %v1057 = vpop.f32.mrb[0].mxu0
    %v1058 = vadd.f32 %v933, %v1057
    %v1059 = vpop.f32.mrb[0].mxu0
    %v1060 = vpop.f32.mrb[0].mxu0
    %v1061 = vadd.f32 %v933, %v1060
    %v1062 = vpop.f32.mrb[0].mxu0
    %1063 = vmatprep.mubr.bf16.mxu0 0
    %1064 = vmatmul.mubr.bf16.gmra.mrb[0].mxu0 %v902
    %v1065 = vpop.f32.mrb[0].mxu0
    %v1066 = vadd.f32 %v933, %v1065
    %v1067 = vpop.f32.mrb[0].mxu0
    %v1068 = vpop.f32.mrb[0].mxu0
    %v1069 = vadd.f32 %v933, %v1068
    %v1070 = vpop.f32.mrb[0].mxu0
    %1071 = vmatprep.mubr.bf16.mxu0 0
    %1072 = vmatmul.mubr.bf16.gmra.mrb[0].mxu0 %v903
    %v1073 = vpop.f32.mrb[0].mxu0
    %v1074 = vadd.f32 %v933, %v1073
    %v1075 = vpop.f32.mrb[0].mxu0
    %v1076 = vpop.f32.mrb[0].mxu0
    %v1077 = vadd.f32 %v933, %v1076
    %v1078 = vpop.f32.mrb[0].mxu0
    %1079 = vmatprep.mubr.bf16.mxu0 0
    %1080 = vmatmul.mubr.bf16.gmra.mrb[0].mxu0 %v904
    %v1081 = vpop.f32.mrb[0].mxu0
    %v1082 = vadd.f32 %v933, %v1081
    %v1083 = vpop.f32.mrb[0].mxu0
    %v1084 = vpop.f32.mrb[0].mxu0
    %v1085 = vadd.f32 %v933, %v1084
    %v1086 = vpop.f32.mrb[0].mxu0
    %1087 = vmatprep.mubr.bf16.mxu0 0
    %1088 = vmatmul.mubr.bf16.gmra.mrb[0].mxu0 %v905
    %v1089 = vpop.f32.mrb[0].mxu0
    %v1090 = vadd.f32 %v933, %v1089
    %v1091 = vpop.f32.mrb[0].mxu0
    %v1092 = vpop.f32.mrb[0].mxu0
    %v1093 = vadd.f32 %v933, %v1092
    %v1094 = vpop.f32.mrb[0].mxu0
    %1095 = vmatprep.mubr.bf16.mxu0 0
    %1096 = vmatmul.mubr.bf16.gmra.mrb[0].mxu0 %v906
    %v1097 = vpop.f32.mrb[0].mxu0
    %v1098 = vadd.f32 %v933, %v1097
    %v1099 = vpop.f32.mrb[0].mxu0
    %v1100 = vpop.f32.mrb[0].mxu0
    %v1101 = vadd.f32 %v933, %v1100
    %v1102 = vpop.f32.mrb[0].mxu0
    %1103 = vmatprep.mubr.bf16.mxu0 0
    %1104 = vmatmul.mubr.bf16.gmra.mrb[0].mxu0 %v907
    %v1105 = vpop.f32.mrb[0].mxu0
    %v1106 = vadd.f32 %v933, %v1105
    %v1107 = vpop.f32.mrb[0].mxu0
    %v1108 = vpop.f32.mrb[0].mxu0
    %v1109 = vadd.f32 %v933, %v1108
    %v1110 = vpop.f32.mrb[0].mxu0
    %1111 = vmatprep.mubr.bf16.mxu0 0
    %1112 = vmatmul.mubr.bf16.gmra.mrb[0].mxu0 %v908
    %v1113 = vpop.f32.mrb[0].mxu0
    %v1114 = vadd.f32 %v933, %v1113
    %v1115 = vpop.f32.mrb[0].mxu0
    %v1116 = vpop.f32.mrb[0].mxu0
    %v1117 = vadd.f32 %v933, %v1116
    %v1118 = vpop.f32.mrb[0].mxu0
    %1119 = vmatprep.mubr.bf16.mxu0 0
    %1120 = vmatmul.mubr.bf16.gmra.mrb[0].mxu0 %v909
    %v1121 = vpop.f32.mrb[0].mxu0
    %v1122 = vadd.f32 %v933, %v1121
    %v1123 = vpop.f32.mrb[0].mxu0
    %v1124 = vpop.f32.mrb[0].mxu0
    %v1125 = vadd.f32 %v933, %v1124
    %v1126 = vpop.f32.mrb[0].mxu0
    %1127 = vmatprep.mubr.bf16.mxu0 0
    %1128 = vmatmul.mubr.bf16.gmra.mrb[0].mxu0 %v910
    %v1129 = vpop.f32.mrb[0].mxu0
    %v1130 = vadd.f32 %v933, %v1129
    %v1131 = vpop.f32.mrb[0].mxu0
    %v1132 = vpop.f32.mrb[0].mxu0
    %v1133 = vadd.f32 %v933, %v1132
    %v1134 = vpop.f32.mrb[0].mxu0
    %1135 = vmatprep.mubr.bf16.mxu0 0
    %1136 = vmatmul.mubr.bf16.gmra.mrb[0].mxu0 %v911
    %v1137 = vpop.f32.mrb[0].mxu0
    %v1138 = vadd.f32 %v933, %v1137
    %v1139 = vpop.f32.mrb[0].mxu0
    %v1140 = vpop.f32.mrb[0].mxu0
    %v1141 = vadd.f32 %v933, %v1140
    %v1142 = vpop.f32.mrb[0].mxu0
    %1143 = vdwg.mxu0
    %1144 = vst [vmem:[%s14] sm:$0xff] %v1018
    %1145 = vst [vmem:[%s14 + $0x8] sm:$0xff] %v1021
    %1146 = vst [vmem:[%s14 + $0x10] sm:$0xff] %v1026
    %1147 = vst [vmem:[%s14 + $0x18] sm:$0xff] %v1029
    %1148 = vst [vmem:[%s14 + $0x20] sm:$0xff] %v1034
    %1149 = vst [vmem:[%s14 + $0x28] sm:$0xff] %v1037
    %1150 = vst [vmem:[%s14 + $0x30] sm:$0xff] %v1042
    %1151 = vst [vmem:[%s14 + $0x38] sm:$0xff] %v1045
    %1152 = vst [vmem:[%s14 + $0x40] sm:$0xff] %v1050
    %1153 = vst [vmem:[%s14 + $0x48] sm:$0xff] %v1053
    %1154 = vst [vmem:[%s14 + $0x50] sm:$0xff] %v1058
    %1155 = vst [vmem:[%s14 + $0x58] sm:$0xff] %v1061
    %1156 = vst [vmem:[%s14 + $0x60] sm:$0xff] %v1066
    %1157 = vst [vmem:[%s14 + $0x68] sm:$0xff] %v1069
    %1158 = vst [vmem:[%s14 + $0x70] sm:$0xff] %v1074
    %1159 = vst [vmem:[%s14 + $0x78] sm:$0xff] %v1077
    %1160 = vst [vmem:[%s14 + $0x80] sm:$0xff] %v1082
    %1161 = vst [vmem:[%s14 + $0x88] sm:$0xff] %v1085
    %1162 = vst [vmem:[%s14 + $0x90] sm:$0xff] %v1090
    %1163 = vst [vmem:[%s14 + $0x98] sm:$0xff] %v1093
    %1164 = vst [vmem:[%s14 + $0xa0] sm:$0xff] %v1098
    %1165 = vst [vmem:[%s14 + $0xa8] sm:$0xff] %v1101
    %1166 = vst [vmem:[%s14 + $0xb0] sm:$0xff] %v1106
    %1167 = vst [vmem:[%s14 + $0xb8] sm:$0xff] %v1109
    %1168 = vst [vmem:[%s14 + $0xc0] sm:$0xff] %v1114
    %1169 = vst [vmem:[%s14 + $0xc8] sm:$0xff] %v1117
    %1170 = vst [vmem:[%s14 + $0xd0] sm:$0xff] %v1122
    %1171 = vst [vmem:[%s14 + $0xd8] sm:$0xff] %v1125
    %1172 = vst [vmem:[%s14 + $0xe0] sm:$0xff] %v1130
    %1173 = vst [vmem:[%s14 + $0xe8] sm:$0xff] %v1133
    %1174 = vst [vmem:[%s14 + $0xf0] sm:$0xff] %v1138
    %1175 = vst [vmem:[%s14 + $0xf8] sm:$0xff] %v1141
    %v1176 = vpack.c.bf16 %v1021, %v1018
    %v1177 = vpack.c.bf16 %v1029, %v1026
    %v1178 = vpack.c.bf16 %v1037, %v1034
    %v1179 = vpack.c.bf16 %v1045, %v1042
    %v1180 = vpack.c.bf16 %v1053, %v1050
    %v1181 = vpack.c.bf16 %v1061, %v1058
    %v1182 = vpack.c.bf16 %v1069, %v1066
    %v1183 = vpack.c.bf16 %v1077, %v1074
    %v1184 = vpack.c.bf16 %v1085, %v1082
    %v1185 = vpack.c.bf16 %v1093, %v1090
    %v1186 = vpack.c.bf16 %v1101, %v1098
    %v1187 = vpack.c.bf16 %v1109, %v1106
    %v1188 = vpack.c.bf16 %v1117, %v1114
    %v1189 = vpack.c.bf16 %v1125, %v1122
    %v1190 = vpack.c.bf16 %v1133, %v1130
    %v1191 = vpack.c.bf16 %v1141, %v1138
    %v1192 = vld [vmem:[#allocation4] sm:$0xf]
    %v1193 = vld [vmem:[#allocation4 + $0x4] sm:$0xf]
    %v1194 = vld [vmem:[#allocation4 + $0x8] sm:$0xf]
    %v1195 = vld [vmem:[#allocation4 + $0xc] sm:$0xf]
    %v1196 = vld [vmem:[#allocation4 + $0x10] sm:$0xf]
    %v1197 = vld [vmem:[#allocation4 + $0x14] sm:$0xf]
    %v1198 = vld [vmem:[#allocation4 + $0x18] sm:$0xf]
    %v1199 = vld [vmem:[#allocation4 + $0x1c] sm:$0xf]
    %v1200 = vld [vmem:[#allocation4 + $0x20] sm:$0xf]
    %v1201 = vld [vmem:[#allocation4 + $0x24] sm:$0xf]
    %v1202 = vld [vmem:[#allocation4 + $0x28] sm:$0xf]
    %v1203 = vld [vmem:[#allocation4 + $0x2c] sm:$0xf]
    %v1204 = vld [vmem:[#allocation4 + $0x30] sm:$0xf]
    %v1205 = vld [vmem:[#allocation4 + $0x34] sm:$0xf]
    %v1206 = vld [vmem:[#allocation4 + $0x38] sm:$0xf]
    %v1207 = vld [vmem:[#allocation4 + $0x3c] sm:$0xf]
    %v1208 = vld [vmem:[%s8] sm:$0x1]
    %v1210 = vlaneseq
    %v1211 = vshrl.u32 %v1210, 7
    %v1212 = vsub.s32 0, %v1211
    %v1213 = vrot.slane %v1208, %v1212
    %v1231 = vunpack.c.l.b16 %v1192
    %v1232 = vunpack.c.l.b16 %v1193
    %v1233 = vunpack.c.l.b16 %v1194
    %v1234 = vunpack.c.l.b16 %v1195
    %v1235 = vunpack.c.l.b16 %v1196
    %v1236 = vunpack.c.l.b16 %v1197
    %v1237 = vunpack.c.l.b16 %v1198
    %v1238 = vunpack.c.l.b16 %v1199
    %v1239 = vunpack.c.l.b16 %v1200
    %v1240 = vunpack.c.l.b16 %v1201
    %v1241 = vunpack.c.l.b16 %v1202
    %v1242 = vunpack.c.l.b16 %v1203
    %v1243 = vunpack.c.l.b16 %v1204
    %v1244 = vunpack.c.l.b16 %v1205
    %v1245 = vunpack.c.l.b16 %v1206
    %v1246 = vunpack.c.l.b16 %v1207
    %v1247 = vpack.c.b16 %v1232, %v1231
    %v1248 = vpack.c.b16 %v1234, %v1233
    %v1249 = vpack.c.b16 %v1236, %v1235
    %v1250 = vpack.c.b16 %v1238, %v1237
    %v1251 = vpack.c.b16 %v1240, %v1239
    %v1252 = vpack.c.b16 %v1242, %v1241
    %v1253 = vpack.c.b16 %v1244, %v1243
    %v1254 = vpack.c.b16 %v1246, %v1245
    %1263 = vmatprep.subr.bf16.mxu0 0
    %1264 = vmatpush1.bf16.msra.mxu0 %v1247
    %1265 = vmatprep.subr.bf16.mxu0 0
    %1266 = vmatpush1.bf16.msra.mxu0 %v1248
    %1267 = vmatprep.subr.bf16.mxu0 0
    %1268 = vmatpush1.bf16.msra.mxu0 %v1249
    %1269 = vmatprep.subr.bf16.mxu0 0
    %1270 = vmatpush1.bf16.msra.mxu0 %v1250
    %1271 = vmatprep.subr.bf16.mxu0 0
    %1272 = vmatpush1.bf16.msra.mxu0 %v1251
    %1273 = vmatprep.subr.bf16.mxu0 0
    %1274 = vmatpush1.bf16.msra.mxu0 %v1252
    %1275 = vmatprep.subr.bf16.mxu0 0
    %1276 = vmatpush1.bf16.msra.mxu0 %v1253
    %1277 = vmatprep.subr.bf16.mxu0 0
    %1278 = vmatpush1.bf16.msra.mxu0 %v1254
    %1279 = vmatprep.subr.bf16.mxu0 0
    %1280 = vmatpush1.bf16.msra.mxu0 0
    %1281 = vmatprep.subr.bf16.mxu0 0
    %1282 = vmatpush1.bf16.msra.mxu0 0
    %1283 = vmatprep.subr.bf16.mxu0 0
    %1284 = vmatpush1.bf16.msra.mxu0 0
    %1285 = vmatprep.subr.bf16.mxu0 0
    %1286 = vmatpush1.bf16.msra.mxu0 0
    %1287 = vmatprep.subr.bf16.mxu0 0
    %1288 = vmatpush1.bf16.msra.mxu0 0
    %1289 = vmatprep.subr.bf16.mxu0 0
    %1290 = vmatpush1.bf16.msra.mxu0 0
    %1291 = vmatprep.subr.bf16.mxu0 0
    %1292 = vmatpush1.bf16.msra.mxu0 0
    %1293 = vmatprep.subr.bf16.mxu0 0
    %1294 = vmatpush1.bf16.msra.mxu0 0
    %1295 = vmatprep.mubr.bf16.mxu0 0
    %1296 = vmatmul.mubr.bf16.gmra.mrb[0].mxu0 %v1176
    %v1297 = vpop.f32.mrb[0].mxu0
    %v1298 = vadd.f32 %v1213, %v1297
    %v1299 = vpop.f32.mrb[0].mxu0
    %v1300 = vpop.f32.mrb[0].mxu0
    %v1301 = vadd.f32 %v1213, %v1300
    %v1302 = vpop.f32.mrb[0].mxu0
    %1303 = vmatprep.mubr.bf16.mxu0 0
    %1304 = vmatmul.mubr.bf16.gmra.mrb[0].mxu0 %v1177
    %v1305 = vpop.f32.mrb[0].mxu0
    %v1306 = vadd.f32 %v1213, %v1305
    %v1307 = vpop.f32.mrb[0].mxu0
    %v1308 = vpop.f32.mrb[0].mxu0
    %v1309 = vadd.f32 %v1213, %v1308
    %v1310 = vpop.f32.mrb[0].mxu0
    %1311 = vmatprep.mubr.bf16.mxu0 0
    %1312 = vmatmul.mubr.bf16.gmra.mrb[0].mxu0 %v1178
    %v1313 = vpop.f32.mrb[0].mxu0
    %v1314 = vadd.f32 %v1213, %v1313
    %v1315 = vpop.f32.mrb[0].mxu0
    %v1316 = vpop.f32.mrb[0].mxu0
    %v1317 = vadd.f32 %v1213, %v1316
    %v1318 = vpop.f32.mrb[0].mxu0
    %1319 = vmatprep.mubr.bf16.mxu0 0
    %1320 = vmatmul.mubr.bf16.gmra.mrb[0].mxu0 %v1179
    %v1321 = vpop.f32.mrb[0].mxu0
    %v1322 = vadd.f32 %v1213, %v1321
    %v1323 = vpop.f32.mrb[0].mxu0
    %v1324 = vpop.f32.mrb[0].mxu0
    %v1325 = vadd.f32 %v1213, %v1324
    %v1326 = vpop.f32.mrb[0].mxu0
    %1327 = vmatprep.mubr.bf16.mxu0 0
    %1328 = vmatmul.mubr.bf16.gmra.mrb[0].mxu0 %v1180
    %v1329 = vpop.f32.mrb[0].mxu0
    %v1330 = vadd.f32 %v1213, %v1329
    %v1331 = vpop.f32.mrb[0].mxu0
    %v1332 = vpop.f32.mrb[0].mxu0
    %v1333 = vadd.f32 %v1213, %v1332
    %v1334 = vpop.f32.mrb[0].mxu0
    %1335 = vmatprep.mubr.bf16.mxu0 0
    %1336 = vmatmul.mubr.bf16.gmra.mrb[0].mxu0 %v1181
    %v1337 = vpop.f32.mrb[0].mxu0
    %v1338 = vadd.f32 %v1213, %v1337
    %v1339 = vpop.f32.mrb[0].mxu0
    %v1340 = vpop.f32.mrb[0].mxu0
    %v1341 = vadd.f32 %v1213, %v1340
    %v1342 = vpop.f32.mrb[0].mxu0
    %1343 = vmatprep.mubr.bf16.mxu0 0
    %1344 = vmatmul.mubr.bf16.gmra.mrb[0].mxu0 %v1182
    %v1345 = vpop.f32.mrb[0].mxu0
    %v1346 = vadd.f32 %v1213, %v1345
    %v1347 = vpop.f32.mrb[0].mxu0
    %v1348 = vpop.f32.mrb[0].mxu0
    %v1349 = vadd.f32 %v1213, %v1348
    %v1350 = vpop.f32.mrb[0].mxu0
    %1351 = vmatprep.mubr.bf16.mxu0 0
    %1352 = vmatmul.mubr.bf16.gmra.mrb[0].mxu0 %v1183
    %v1353 = vpop.f32.mrb[0].mxu0
    %v1354 = vadd.f32 %v1213, %v1353
    %v1355 = vpop.f32.mrb[0].mxu0
    %v1356 = vpop.f32.mrb[0].mxu0
    %v1357 = vadd.f32 %v1213, %v1356
    %v1358 = vpop.f32.mrb[0].mxu0
    %1359 = vmatprep.mubr.bf16.mxu0 0
    %1360 = vmatmul.mubr.bf16.gmra.mrb[0].mxu0 %v1184
    %v1361 = vpop.f32.mrb[0].mxu0
    %v1362 = vadd.f32 %v1213, %v1361
    %v1363 = vpop.f32.mrb[0].mxu0
    %v1364 = vpop.f32.mrb[0].mxu0
    %v1365 = vadd.f32 %v1213, %v1364
    %v1366 = vpop.f32.mrb[0].mxu0
    %1367 = vmatprep.mubr.bf16.mxu0 0
    %1368 = vmatmul.mubr.bf16.gmra.mrb[0].mxu0 %v1185
    %v1369 = vpop.f32.mrb[0].mxu0
    %v1370 = vadd.f32 %v1213, %v1369
    %v1371 = vpop.f32.mrb[0].mxu0
    %v1372 = vpop.f32.mrb[0].mxu0
    %v1373 = vadd.f32 %v1213, %v1372
    %v1374 = vpop.f32.mrb[0].mxu0
    %1375 = vmatprep.mubr.bf16.mxu0 0
    %1376 = vmatmul.mubr.bf16.gmra.mrb[0].mxu0 %v1186
    %v1377 = vpop.f32.mrb[0].mxu0
    %v1378 = vadd.f32 %v1213, %v1377
    %v1379 = vpop.f32.mrb[0].mxu0
    %v1380 = vpop.f32.mrb[0].mxu0
    %v1381 = vadd.f32 %v1213, %v1380
    %v1382 = vpop.f32.mrb[0].mxu0
    %1383 = vmatprep.mubr.bf16.mxu0 0
    %1384 = vmatmul.mubr.bf16.gmra.mrb[0].mxu0 %v1187
    %v1385 = vpop.f32.mrb[0].mxu0
    %v1386 = vadd.f32 %v1213, %v1385
    %v1387 = vpop.f32.mrb[0].mxu0
    %v1388 = vpop.f32.mrb[0].mxu0
    %v1389 = vadd.f32 %v1213, %v1388
    %v1390 = vpop.f32.mrb[0].mxu0
    %1391 = vmatprep.mubr.bf16.mxu0 0
    %1392 = vmatmul.mubr.bf16.gmra.mrb[0].mxu0 %v1188
    %v1393 = vpop.f32.mrb[0].mxu0
    %v1394 = vadd.f32 %v1213, %v1393
    %v1395 = vpop.f32.mrb[0].mxu0
    %v1396 = vpop.f32.mrb[0].mxu0
    %v1397 = vadd.f32 %v1213, %v1396
    %v1398 = vpop.f32.mrb[0].mxu0
    %1399 = vmatprep.mubr.bf16.mxu0 0
    %1400 = vmatmul.mubr.bf16.gmra.mrb[0].mxu0 %v1189
    %v1401 = vpop.f32.mrb[0].mxu0
    %v1402 = vadd.f32 %v1213, %v1401
    %v1403 = vpop.f32.mrb[0].mxu0
    %v1404 = vpop.f32.mrb[0].mxu0
    %v1405 = vadd.f32 %v1213, %v1404
    %v1406 = vpop.f32.mrb[0].mxu0
    %1407 = vmatprep.mubr.bf16.mxu0 0
    %1408 = vmatmul.mubr.bf16.gmra.mrb[0].mxu0 %v1190
    %v1409 = vpop.f32.mrb[0].mxu0
    %v1410 = vadd.f32 %v1213, %v1409
    %v1411 = vpop.f32.mrb[0].mxu0
    %v1412 = vpop.f32.mrb[0].mxu0
    %v1413 = vadd.f32 %v1213, %v1412
    %v1414 = vpop.f32.mrb[0].mxu0
    %1415 = vmatprep.mubr.bf16.mxu0 0
    %1416 = vmatmul.mubr.bf16.gmra.mrb[0].mxu0 %v1191
    %v1417 = vpop.f32.mrb[0].mxu0
    %v1418 = vadd.f32 %v1213, %v1417
    %v1419 = vpop.f32.mrb[0].mxu0
    %v1420 = vpop.f32.mrb[0].mxu0
    %v1421 = vadd.f32 %v1213, %v1420
    %v1422 = vpop.f32.mrb[0].mxu0
    %1423 = vdwg.mxu0
    %v1424 = vpack.c.bf16 %v1301, %v1298
    %v1425 = vpack.c.bf16 %v1309, %v1306
    %v1426 = vpack.c.bf16 %v1317, %v1314
    %v1427 = vpack.c.bf16 %v1325, %v1322
    %v1428 = vpack.c.bf16 %v1333, %v1330
    %v1429 = vpack.c.bf16 %v1341, %v1338
    %v1430 = vpack.c.bf16 %v1349, %v1346
    %v1431 = vpack.c.bf16 %v1357, %v1354
    %v1432 = vpack.c.bf16 %v1365, %v1362
    %v1433 = vpack.c.bf16 %v1373, %v1370
    %v1434 = vpack.c.bf16 %v1381, %v1378
    %v1435 = vpack.c.bf16 %v1389, %v1386
    %v1436 = vpack.c.bf16 %v1397, %v1394
    %v1437 = vpack.c.bf16 %v1405, %v1402
    %v1438 = vpack.c.bf16 %v1413, %v1410
    %v1439 = vpack.c.bf16 %v1421, %v1418
    %v1440 = vld [vmem:[%s9] sm:$0xff]
    %v1441 = vld [vmem:[%s9 + $0x8] sm:$0xff]
    %v1442 = vld [vmem:[%s9 + $0x10] sm:$0xff]
    %v1443 = vld [vmem:[%s9 + $0x18] sm:$0xff]
    %v1444 = vld [vmem:[%s9 + $0x20] sm:$0xff]
    %v1445 = vld [vmem:[%s9 + $0x28] sm:$0xff]
    %v1446 = vld [vmem:[%s9 + $0x30] sm:$0xff]
    %v1447 = vld [vmem:[%s9 + $0x38] sm:$0xff]
    %v1448 = vld [vmem:[%s9 + $0x40] sm:$0xff]
    %v1449 = vld [vmem:[%s9 + $0x48] sm:$0xff]
    %v1450 = vld [vmem:[%s9 + $0x50] sm:$0xff]
    %v1451 = vld [vmem:[%s9 + $0x58] sm:$0xff]
    %v1452 = vld [vmem:[%s9 + $0x60] sm:$0xff]
    %v1453 = vld [vmem:[%s9 + $0x68] sm:$0xff]
    %v1454 = vld [vmem:[%s9 + $0x70] sm:$0xff]
    %v1455 = vld [vmem:[%s9 + $0x78] sm:$0xff]
    %v1456 = vld [vmem:[%s10] sm:$0x3]
    %v1458 = vlaneseq
    %v1459 = vshrl.u32 %v1458, 7
    %v1460 = vsub.s32 0, %v1459
    %v1461 = vrot.slane %v1456, %v1460
    %v1462 = vlaneseq
    %v1463 = vshrl.u32 %v1462, 7
    %v1464 = vsub.s32 1, %v1463
    %v1465 = vrot.slane %v1456, %v1464
    %v1484 = vunpack.c.l.b16 %v1440
    %v1485 = vunpack.c.h.b16 %v1440
    %v1486 = vunpack.c.l.b16 %v1441
    %v1487 = vunpack.c.h.b16 %v1441
    %v1488 = vunpack.c.l.b16 %v1442
    %v1489 = vunpack.c.h.b16 %v1442
    %v1490 = vunpack.c.l.b16 %v1443
    %v1491 = vunpack.c.h.b16 %v1443
    %v1492 = vunpack.c.l.b16 %v1444
    %v1493 = vunpack.c.h.b16 %v1444
    %v1494 = vunpack.c.l.b16 %v1445
    %v1495 = vunpack.c.h.b16 %v1445
    %v1496 = vunpack.c.l.b16 %v1446
    %v1497 = vunpack.c.h.b16 %v1446
    %v1498 = vunpack.c.l.b16 %v1447
    %v1499 = vunpack.c.h.b16 %v1447
    %v1500 = vunpack.c.l.b16 %v1448
    %v1501 = vunpack.c.h.b16 %v1448
    %v1502 = vunpack.c.l.b16 %v1449
    %v1503 = vunpack.c.h.b16 %v1449
    %v1504 = vunpack.c.l.b16 %v1450
    %v1505 = vunpack.c.h.b16 %v1450
    %v1506 = vunpack.c.l.b16 %v1451
    %v1507 = vunpack.c.h.b16 %v1451
    %v1508 = vunpack.c.l.b16 %v1452
    %v1509 = vunpack.c.h.b16 %v1452
    %v1510 = vunpack.c.l.b16 %v1453
    %v1511 = vunpack.c.h.b16 %v1453
    %v1512 = vunpack.c.l.b16 %v1454
    %v1513 = vunpack.c.h.b16 %v1454
    %v1514 = vunpack.c.l.b16 %v1455
    %v1515 = vunpack.c.h.b16 %v1455
    %v1516 = vpack.c.b16 %v1486, %v1484
    %v1517 = vpack.c.b16 %v1487, %v1485
    %v1518 = vpack.c.b16 %v1490, %v1488
    %v1519 = vpack.c.b16 %v1491, %v1489
    %v1520 = vpack.c.b16 %v1494, %v1492
    %v1521 = vpack.c.b16 %v1495, %v1493
    %v1522 = vpack.c.b16 %v1498, %v1496
    %v1523 = vpack.c.b16 %v1499, %v1497
    %v1524 = vpack.c.b16 %v1502, %v1500
    %v1525 = vpack.c.b16 %v1503, %v1501
    %v1526 = vpack.c.b16 %v1506, %v1504
    %v1527 = vpack.c.b16 %v1507, %v1505
    %v1528 = vpack.c.b16 %v1510, %v1508
    %v1529 = vpack.c.b16 %v1511, %v1509
    %v1530 = vpack.c.b16 %v1514, %v1512
    %v1531 = vpack.c.b16 %v1515, %v1513
    %1548 = vmatprep.subr.bf16.mxu0 %v1517
    %1549 = vmatpush1.bf16.msra.mxu0 %v1516
    %1550 = vmatprep.subr.bf16.mxu0 %v1519
    %1551 = vmatpush1.bf16.msra.mxu0 %v1518
    %1552 = vmatprep.subr.bf16.mxu0 %v1521
    %1553 = vmatpush1.bf16.msra.mxu0 %v1520
    %1554 = vmatprep.subr.bf16.mxu0 %v1523
    %1555 = vmatpush1.bf16.msra.mxu0 %v1522
    %1556 = vmatprep.subr.bf16.mxu0 %v1525
    %1557 = vmatpush1.bf16.msra.mxu0 %v1524
    %1558 = vmatprep.subr.bf16.mxu0 %v1527
    %1559 = vmatpush1.bf16.msra.mxu0 %v1526
    %1560 = vmatprep.subr.bf16.mxu0 %v1529
    %1561 = vmatpush1.bf16.msra.mxu0 %v1528
    %1562 = vmatprep.subr.bf16.mxu0 %v1531
    %1563 = vmatpush1.bf16.msra.mxu0 %v1530
    %1564 = vmatprep.subr.bf16.mxu0 0
    %1565 = vmatpush1.bf16.msra.mxu0 0
    %1566 = vmatprep.subr.bf16.mxu0 0
    %1567 = vmatpush1.bf16.msra.mxu0 0
    %1568 = vmatprep.subr.bf16.mxu0 0
    %1569 = vmatpush1.bf16.msra.mxu0 0
    %1570 = vmatprep.subr.bf16.mxu0 0
    %1571 = vmatpush1.bf16.msra.mxu0 0
    %1572 = vmatprep.subr.bf16.mxu0 0
    %1573 = vmatpush1.bf16.msra.mxu0 0
    %1574 = vmatprep.subr.bf16.mxu0 0
    %1575 = vmatpush1.bf16.msra.mxu0 0
    %1576 = vmatprep.subr.bf16.mxu0 0
    %1577 = vmatpush1.bf16.msra.mxu0 0
    %1578 = vmatprep.subr.bf16.mxu0 0
    %1579 = vmatpush1.bf16.msra.mxu0 0
    %1580 = vmatprep.mubr.bf16.mxu0 0
    %1581 = vmatmul.mubr.bf16.gmra.mrb[0].mxu0 %v1424
    %v1582 = vpop.f32.mrb[0].mxu0
    %v1583 = vadd.f32 %v1461, %v1582
    %v1584 = vpop.f32.mrb[0].mxu0
    %v1585 = vadd.f32 %v1465, %v1584
    %v1586 = vpop.f32.mrb[0].mxu0
    %v1587 = vadd.f32 %v1461, %v1586
    %v1588 = vpop.f32.mrb[0].mxu0
    %v1589 = vadd.f32 %v1465, %v1588
    %1590 = vmatprep.mubr.bf16.mxu0 0
    %1591 = vmatmul.mubr.bf16.gmra.mrb[0].mxu0 %v1425
    %v1592 = vpop.f32.mrb[0].mxu0
    %v1593 = vadd.f32 %v1461, %v1592
    %v1594 = vpop.f32.mrb[0].mxu0
    %v1595 = vadd.f32 %v1465, %v1594
    %v1596 = vpop.f32.mrb[0].mxu0
    %v1597 = vadd.f32 %v1461, %v1596
    %v1598 = vpop.f32.mrb[0].mxu0
    %v1599 = vadd.f32 %v1465, %v1598
    %1600 = vmatprep.mubr.bf16.mxu0 0
    %1601 = vmatmul.mubr.bf16.gmra.mrb[0].mxu0 %v1426
    %v1602 = vpop.f32.mrb[0].mxu0
    %v1603 = vadd.f32 %v1461, %v1602
    %v1604 = vpop.f32.mrb[0].mxu0
    %v1605 = vadd.f32 %v1465, %v1604
    %v1606 = vpop.f32.mrb[0].mxu0
    %v1607 = vadd.f32 %v1461, %v1606
    %v1608 = vpop.f32.mrb[0].mxu0
    %v1609 = vadd.f32 %v1465, %v1608
    %1610 = vmatprep.mubr.bf16.mxu0 0
    %1611 = vmatmul.mubr.bf16.gmra.mrb[0].mxu0 %v1427
    %v1612 = vpop.f32.mrb[0].mxu0
    %v1613 = vadd.f32 %v1461, %v1612
    %v1614 = vpop.f32.mrb[0].mxu0
    %v1615 = vadd.f32 %v1465, %v1614
    %v1616 = vpop.f32.mrb[0].mxu0
    %v1617 = vadd.f32 %v1461, %v1616
    %v1618 = vpop.f32.mrb[0].mxu0
    %v1619 = vadd.f32 %v1465, %v1618
    %1620 = vmatprep.mubr.bf16.mxu0 0
    %1621 = vmatmul.mubr.bf16.gmra.mrb[0].mxu0 %v1428
    %v1622 = vpop.f32.mrb[0].mxu0
    %v1623 = vadd.f32 %v1461, %v1622
    %v1624 = vpop.f32.mrb[0].mxu0
    %v1625 = vadd.f32 %v1465, %v1624
    %v1626 = vpop.f32.mrb[0].mxu0
    %v1627 = vadd.f32 %v1461, %v1626
    %v1628 = vpop.f32.mrb[0].mxu0
    %v1629 = vadd.f32 %v1465, %v1628
    %1630 = vmatprep.mubr.bf16.mxu0 0
    %1631 = vmatmul.mubr.bf16.gmra.mrb[0].mxu0 %v1429
    %v1632 = vpop.f32.mrb[0].mxu0
    %v1633 = vadd.f32 %v1461, %v1632
    %v1634 = vpop.f32.mrb[0].mxu0
    %v1635 = vadd.f32 %v1465, %v1634
    %v1636 = vpop.f32.mrb[0].mxu0
    %v1637 = vadd.f32 %v1461, %v1636
    %v1638 = vpop.f32.mrb[0].mxu0
    %v1639 = vadd.f32 %v1465, %v1638
    %1640 = vmatprep.mubr.bf16.mxu0 0
    %1641 = vmatmul.mubr.bf16.gmra.mrb[0].mxu0 %v1430
    %v1642 = vpop.f32.mrb[0].mxu0
    %v1643 = vadd.f32 %v1461, %v1642
    %v1644 = vpop.f32.mrb[0].mxu0
    %v1645 = vadd.f32 %v1465, %v1644
    %v1646 = vpop.f32.mrb[0].mxu0
    %v1647 = vadd.f32 %v1461, %v1646
    %v1648 = vpop.f32.mrb[0].mxu0
    %v1649 = vadd.f32 %v1465, %v1648
    %1650 = vmatprep.mubr.bf16.mxu0 0
    %1651 = vmatmul.mubr.bf16.gmra.mrb[0].mxu0 %v1431
    %v1652 = vpop.f32.mrb[0].mxu0
    %v1653 = vadd.f32 %v1461, %v1652
    %v1654 = vpop.f32.mrb[0].mxu0
    %v1655 = vadd.f32 %v1465, %v1654
    %v1656 = vpop.f32.mrb[0].mxu0
    %v1657 = vadd.f32 %v1461, %v1656
    %v1658 = vpop.f32.mrb[0].mxu0
    %v1659 = vadd.f32 %v1465, %v1658
    %1660 = vmatprep.mubr.bf16.mxu0 0
    %1661 = vmatmul.mubr.bf16.gmra.mrb[0].mxu0 %v1432
    %v1662 = vpop.f32.mrb[0].mxu0
    %v1663 = vadd.f32 %v1461, %v1662
    %v1664 = vpop.f32.mrb[0].mxu0
    %v1665 = vadd.f32 %v1465, %v1664
    %v1666 = vpop.f32.mrb[0].mxu0
    %v1667 = vadd.f32 %v1461, %v1666
    %v1668 = vpop.f32.mrb[0].mxu0
    %v1669 = vadd.f32 %v1465, %v1668
    %1670 = vmatprep.mubr.bf16.mxu0 0
    %1671 = vmatmul.mubr.bf16.gmra.mrb[0].mxu0 %v1433
    %v1672 = vpop.f32.mrb[0].mxu0
    %v1673 = vadd.f32 %v1461, %v1672
    %v1674 = vpop.f32.mrb[0].mxu0
    %v1675 = vadd.f32 %v1465, %v1674
    %v1676 = vpop.f32.mrb[0].mxu0
    %v1677 = vadd.f32 %v1461, %v1676
    %v1678 = vpop.f32.mrb[0].mxu0
    %v1679 = vadd.f32 %v1465, %v1678
    %1680 = vmatprep.mubr.bf16.mxu0 0
    %1681 = vmatmul.mubr.bf16.gmra.mrb[0].mxu0 %v1434
    %v1682 = vpop.f32.mrb[0].mxu0
    %v1683 = vadd.f32 %v1461, %v1682
    %v1684 = vpop.f32.mrb[0].mxu0
    %v1685 = vadd.f32 %v1465, %v1684
    %v1686 = vpop.f32.mrb[0].mxu0
    %v1687 = vadd.f32 %v1461, %v1686
    %v1688 = vpop.f32.mrb[0].mxu0
    %v1689 = vadd.f32 %v1465, %v1688
    %1690 = vmatprep.mubr.bf16.mxu0 0
    %1691 = vmatmul.mubr.bf16.gmra.mrb[0].mxu0 %v1435
    %v1692 = vpop.f32.mrb[0].mxu0
    %v1693 = vadd.f32 %v1461, %v1692
    %v1694 = vpop.f32.mrb[0].mxu0
    %v1695 = vadd.f32 %v1465, %v1694
    %v1696 = vpop.f32.mrb[0].mxu0
    %v1697 = vadd.f32 %v1461, %v1696
    %v1698 = vpop.f32.mrb[0].mxu0
    %v1699 = vadd.f32 %v1465, %v1698
    %1700 = vmatprep.mubr.bf16.mxu0 0
    %1701 = vmatmul.mubr.bf16.gmra.mrb[0].mxu0 %v1436
    %v1702 = vpop.f32.mrb[0].mxu0
    %v1703 = vadd.f32 %v1461, %v1702
    %v1704 = vpop.f32.mrb[0].mxu0
    %v1705 = vadd.f32 %v1465, %v1704
    %v1706 = vpop.f32.mrb[0].mxu0
    %v1707 = vadd.f32 %v1461, %v1706
    %v1708 = vpop.f32.mrb[0].mxu0
    %v1709 = vadd.f32 %v1465, %v1708
    %1710 = vmatprep.mubr.bf16.mxu0 0
    %1711 = vmatmul.mubr.bf16.gmra.mrb[0].mxu0 %v1437
    %v1712 = vpop.f32.mrb[0].mxu0
    %v1713 = vadd.f32 %v1461, %v1712
    %v1714 = vpop.f32.mrb[0].mxu0
    %v1715 = vadd.f32 %v1465, %v1714
    %v1716 = vpop.f32.mrb[0].mxu0
    %v1717 = vadd.f32 %v1461, %v1716
    %v1718 = vpop.f32.mrb[0].mxu0
    %v1719 = vadd.f32 %v1465, %v1718
    %1720 = vmatprep.mubr.bf16.mxu0 0
    %1721 = vmatmul.mubr.bf16.gmra.mrb[0].mxu0 %v1438
    %v1722 = vpop.f32.mrb[0].mxu0
    %v1723 = vadd.f32 %v1461, %v1722
    %v1724 = vpop.f32.mrb[0].mxu0
    %v1725 = vadd.f32 %v1465, %v1724
    %v1726 = vpop.f32.mrb[0].mxu0
    %v1727 = vadd.f32 %v1461, %v1726
    %v1728 = vpop.f32.mrb[0].mxu0
    %v1729 = vadd.f32 %v1465, %v1728
    %1730 = vmatprep.mubr.bf16.mxu0 0
    %1731 = vmatmul.mubr.bf16.gmra.mrb[0].mxu0 %v1439
    %v1732 = vpop.f32.mrb[0].mxu0
    %v1733 = vadd.f32 %v1461, %v1732
    %v1734 = vpop.f32.mrb[0].mxu0
    %v1735 = vadd.f32 %v1465, %v1734
    %v1736 = vpop.f32.mrb[0].mxu0
    %v1737 = vadd.f32 %v1461, %v1736
    %v1738 = vpop.f32.mrb[0].mxu0
    %v1739 = vadd.f32 %v1465, %v1738
    %1740 = vdwg.mxu0
    %v1741 = vmax.f32 %v1583, 0.0
    %v1742 = vmax.f32 %v1585, 0.0
    %v1743 = vmax.f32 %v1587, 0.0
    %v1744 = vmax.f32 %v1589, 0.0
    %v1745 = vmax.f32 %v1593, 0.0
    %v1746 = vmax.f32 %v1595, 0.0
    %v1747 = vmax.f32 %v1597, 0.0
    %v1748 = vmax.f32 %v1599, 0.0
    %v1749 = vmax.f32 %v1603, 0.0
    %v1750 = vmax.f32 %v1605, 0.0
    %v1751 = vmax.f32 %v1607, 0.0
    %v1752 = vmax.f32 %v1609, 0.0
    %v1753 = vmax.f32 %v1613, 0.0
    %v1754 = vmax.f32 %v1615, 0.0
    %v1755 = vmax.f32 %v1617, 0.0
    %v1756 = vmax.f32 %v1619, 0.0
    %v1757 = vmax.f32 %v1623, 0.0
    %v1758 = vmax.f32 %v1625, 0.0
    %v1759 = vmax.f32 %v1627, 0.0
    %v1760 = vmax.f32 %v1629, 0.0
    %v1761 = vmax.f32 %v1633, 0.0
    %v1762 = vmax.f32 %v1635, 0.0
    %v1763 = vmax.f32 %v1637, 0.0
    %v1764 = vmax.f32 %v1639, 0.0
    %v1765 = vmax.f32 %v1643, 0.0
    %v1766 = vmax.f32 %v1645, 0.0
    %v1767 = vmax.f32 %v1647, 0.0
    %v1768 = vmax.f32 %v1649, 0.0
    %v1769 = vmax.f32 %v1653, 0.0
    %v1770 = vmax.f32 %v1655, 0.0
    %v1771 = vmax.f32 %v1657, 0.0
    %v1772 = vmax.f32 %v1659, 0.0
    %v1773 = vmax.f32 %v1663, 0.0
    %v1774 = vmax.f32 %v1665, 0.0
    %v1775 = vmax.f32 %v1667, 0.0
    %v1776 = vmax.f32 %v1669, 0.0
    %v1777 = vmax.f32 %v1673, 0.0
    %v1778 = vmax.f32 %v1675, 0.0
    %v1779 = vmax.f32 %v1677, 0.0
    %v1780 = vmax.f32 %v1679, 0.0
    %v1781 = vmax.f32 %v1683, 0.0
    %v1782 = vmax.f32 %v1685, 0.0
    %v1783 = vmax.f32 %v1687, 0.0
    %v1784 = vmax.f32 %v1689, 0.0
    %v1785 = vmax.f32 %v1693, 0.0
    %v1786 = vmax.f32 %v1695, 0.0
    %v1787 = vmax.f32 %v1697, 0.0
    %v1788 = vmax.f32 %v1699, 0.0
    %v1789 = vmax.f32 %v1703, 0.0
    %v1790 = vmax.f32 %v1705, 0.0
    %v1791 = vmax.f32 %v1707, 0.0
    %v1792 = vmax.f32 %v1709, 0.0
    %v1793 = vmax.f32 %v1713, 0.0
    %v1794 = vmax.f32 %v1715, 0.0
    %v1795 = vmax.f32 %v1717, 0.0
    %v1796 = vmax.f32 %v1719, 0.0
    %v1797 = vmax.f32 %v1723, 0.0
    %v1798 = vmax.f32 %v1725, 0.0
    %v1799 = vmax.f32 %v1727, 0.0
    %v1800 = vmax.f32 %v1729, 0.0
    %v1801 = vmax.f32 %v1733, 0.0
    %v1802 = vmax.f32 %v1735, 0.0
    %v1803 = vmax.f32 %v1737, 0.0
    %v1804 = vmax.f32 %v1739, 0.0
    %v1805 = vpack.c.bf16 %v1743, %v1741
    %v1806 = vpack.c.bf16 %v1744, %v1742
    %v1807 = vpack.c.bf16 %v1747, %v1745
    %v1808 = vpack.c.bf16 %v1748, %v1746
    %v1809 = vpack.c.bf16 %v1751, %v1749
    %v1810 = vpack.c.bf16 %v1752, %v1750
    %v1811 = vpack.c.bf16 %v1755, %v1753
    %v1812 = vpack.c.bf16 %v1756, %v1754
    %v1813 = vpack.c.bf16 %v1759, %v1757
    %v1814 = vpack.c.bf16 %v1760, %v1758
    %v1815 = vpack.c.bf16 %v1763, %v1761
    %v1816 = vpack.c.bf16 %v1764, %v1762
    %v1817 = vpack.c.bf16 %v1767, %v1765
    %v1818 = vpack.c.bf16 %v1768, %v1766
    %v1819 = vpack.c.bf16 %v1771, %v1769
    %v1820 = vpack.c.bf16 %v1772, %v1770
    %v1821 = vpack.c.bf16 %v1775, %v1773
    %v1822 = vpack.c.bf16 %v1776, %v1774
    %v1823 = vpack.c.bf16 %v1779, %v1777
    %v1824 = vpack.c.bf16 %v1780, %v1778
    %v1825 = vpack.c.bf16 %v1783, %v1781
    %v1826 = vpack.c.bf16 %v1784, %v1782
    %v1827 = vpack.c.bf16 %v1787, %v1785
    %v1828 = vpack.c.bf16 %v1788, %v1786
    %v1829 = vpack.c.bf16 %v1791, %v1789
    %v1830 = vpack.c.bf16 %v1792, %v1790
    %v1831 = vpack.c.bf16 %v1795, %v1793
    %v1832 = vpack.c.bf16 %v1796, %v1794
    %v1833 = vpack.c.bf16 %v1799, %v1797
    %v1834 = vpack.c.bf16 %v1800, %v1798
    %v1835 = vpack.c.bf16 %v1803, %v1801
    %v1836 = vpack.c.bf16 %v1804, %v1802
    %v1837 = vld [vmem:[%s11] sm:$0xf]
    %v1838 = vld [vmem:[%s11 + $0x4] sm:$0xf]
    %v1839 = vld [vmem:[%s11 + $0x8] sm:$0xf]
    %v1840 = vld [vmem:[%s11 + $0xc] sm:$0xf]
    %v1841 = vld [vmem:[%s11 + $0x10] sm:$0xf]
    %v1842 = vld [vmem:[%s11 + $0x14] sm:$0xf]
    %v1843 = vld [vmem:[%s11 + $0x18] sm:$0xf]
    %v1844 = vld [vmem:[%s11 + $0x1c] sm:$0xf]
    %v1845 = vld [vmem:[%s11 + $0x20] sm:$0xf]
    %v1846 = vld [vmem:[%s11 + $0x24] sm:$0xf]
    %v1847 = vld [vmem:[%s11 + $0x28] sm:$0xf]
    %v1848 = vld [vmem:[%s11 + $0x2c] sm:$0xf]
    %v1849 = vld [vmem:[%s11 + $0x30] sm:$0xf]
    %v1850 = vld [vmem:[%s11 + $0x34] sm:$0xf]
    %v1851 = vld [vmem:[%s11 + $0x38] sm:$0xf]
    %v1852 = vld [vmem:[%s11 + $0x3c] sm:$0xf]
    %v1853 = vld [vmem:[%s11 + $0x40] sm:$0xf]
    %v1854 = vld [vmem:[%s11 + $0x44] sm:$0xf]
    %v1855 = vld [vmem:[%s11 + $0x48] sm:$0xf]
    %v1856 = vld [vmem:[%s11 + $0x4c] sm:$0xf]
    %v1857 = vld [vmem:[%s11 + $0x50] sm:$0xf]
    %v1858 = vld [vmem:[%s11 + $0x54] sm:$0xf]
    %v1859 = vld [vmem:[%s11 + $0x58] sm:$0xf]
    %v1860 = vld [vmem:[%s11 + $0x5c] sm:$0xf]
    %v1861 = vld [vmem:[%s11 + $0x60] sm:$0xf]
    %v1862 = vld [vmem:[%s11 + $0x64] sm:$0xf]
    %v1863 = vld [vmem:[%s11 + $0x68] sm:$0xf]
    %v1864 = vld [vmem:[%s11 + $0x6c] sm:$0xf]
    %v1865 = vld [vmem:[%s11 + $0x70] sm:$0xf]
    %v1866 = vld [vmem:[%s11 + $0x74] sm:$0xf]
    %v1867 = vld [vmem:[%s11 + $0x78] sm:$0xf]
    %v1868 = vld [vmem:[%s11 + $0x7c] sm:$0xf]
    %v1869 = vld [vmem:[%s12] sm:$0x1]
    %v1871 = vlaneseq
    %v1872 = vshrl.u32 %v1871, 7
    %v1873 = vsub.s32 0, %v1872
    %v1874 = vrot.slane %v1869, %v1873
    %v1908 = vunpack.c.l.b16 %v1837
    %v1909 = vunpack.c.l.b16 %v1838
    %v1910 = vunpack.c.l.b16 %v1839
    %v1911 = vunpack.c.l.b16 %v1840
    %v1912 = vunpack.c.l.b16 %v1841
    %v1913 = vunpack.c.l.b16 %v1842
    %v1914 = vunpack.c.l.b16 %v1843
    %v1915 = vunpack.c.l.b16 %v1844
    %v1916 = vunpack.c.l.b16 %v1845
    %v1917 = vunpack.c.l.b16 %v1846
    %v1918 = vunpack.c.l.b16 %v1847
    %v1919 = vunpack.c.l.b16 %v1848
    %v1920 = vunpack.c.l.b16 %v1849
    %v1921 = vunpack.c.l.b16 %v1850
    %v1922 = vunpack.c.l.b16 %v1851
    %v1923 = vunpack.c.l.b16 %v1852
    %v1924 = vunpack.c.l.b16 %v1853
    %v1925 = vunpack.c.l.b16 %v1854
    %v1926 = vunpack.c.l.b16 %v1855
    %v1927 = vunpack.c.l.b16 %v1856
    %v1928 = vunpack.c.l.b16 %v1857
    %v1929 = vunpack.c.l.b16 %v1858
    %v1930 = vunpack.c.l.b16 %v1859
    %v1931 = vunpack.c.l.b16 %v1860
    %v1932 = vunpack.c.l.b16 %v1861
    %v1933 = vunpack.c.l.b16 %v1862
    %v1934 = vunpack.c.l.b16 %v1863
    %v1935 = vunpack.c.l.b16 %v1864
    %v1936 = vunpack.c.l.b16 %v1865
    %v1937 = vunpack.c.l.b16 %v1866
    %v1938 = vunpack.c.l.b16 %v1867
    %v1939 = vunpack.c.l.b16 %v1868
    %v1940 = vpack.c.b16 %v1909, %v1908
    %v1941 = vpack.c.b16 %v1911, %v1910
    %v1942 = vpack.c.b16 %v1913, %v1912
    %v1943 = vpack.c.b16 %v1915, %v1914
    %v1944 = vpack.c.b16 %v1917, %v1916
    %v1945 = vpack.c.b16 %v1919, %v1918
    %v1946 = vpack.c.b16 %v1921, %v1920
    %v1947 = vpack.c.b16 %v1923, %v1922
    %v1948 = vpack.c.b16 %v1925, %v1924
    %v1949 = vpack.c.b16 %v1927, %v1926
    %v1950 = vpack.c.b16 %v1929, %v1928
    %v1951 = vpack.c.b16 %v1931, %v1930
    %v1952 = vpack.c.b16 %v1933, %v1932
    %v1953 = vpack.c.b16 %v1935, %v1934
    %v1954 = vpack.c.b16 %v1937, %v1936
    %v1955 = vpack.c.b16 %v1939, %v1938
    %1972 = vmatprep.subr.bf16.mxu0 0
    %1973 = vmatpush1.bf16.msra.mxu0 %v1940
    %1974 = vmatprep.subr.bf16.mxu0 0
    %1975 = vmatpush1.bf16.msra.mxu0 %v1941
    %1976 = vmatprep.subr.bf16.mxu0 0
    %1977 = vmatpush1.bf16.msra.mxu0 %v1942
    %1978 = vmatprep.subr.bf16.mxu0 0
    %1979 = vmatpush1.bf16.msra.mxu0 %v1943
    %1980 = vmatprep.subr.bf16.mxu0 0
    %1981 = vmatpush1.bf16.msra.mxu0 %v1944
    %1982 = vmatprep.subr.bf16.mxu0 0
    %1983 = vmatpush1.bf16.msra.mxu0 %v1945
    %1984 = vmatprep.subr.bf16.mxu0 0
    %1985 = vmatpush1.bf16.msra.mxu0 %v1946
    %1986 = vmatprep.subr.bf16.mxu0 0
    %1987 = vmatpush1.bf16.msra.mxu0 %v1947
    %1988 = vmatprep.subr.bf16.mxu0 0
    %1989 = vmatpush1.bf16.msra.mxu0 %v1948
    %1990 = vmatprep.subr.bf16.mxu0 0
    %1991 = vmatpush1.bf16.msra.mxu0 %v1949
    %1992 = vmatprep.subr.bf16.mxu0 0
    %1993 = vmatpush1.bf16.msra.mxu0 %v1950
    %1994 = vmatprep.subr.bf16.mxu0 0
    %1995 = vmatpush1.bf16.msra.mxu0 %v1951
    %1996 = vmatprep.subr.bf16.mxu0 0
    %1997 = vmatpush1.bf16.msra.mxu0 %v1952
    %1998 = vmatprep.subr.bf16.mxu0 0
    %1999 = vmatpush1.bf16.msra.mxu0 %v1953
    %2000 = vmatprep.subr.bf16.mxu0 0
    %2001 = vmatpush1.bf16.msra.mxu0 %v1954
    %2002 = vmatprep.subr.bf16.mxu0 0
    %2003 = vmatpush1.bf16.msra.mxu0 %v1955
    %2004 = vmatprep.mubr.bf16.mxu0 %v1806
    %2005 = vmatmul.mubr.bf16.gmra.mrb[0].mxu0 %v1805
    %v2006 = vpop.f32.mrb[0].mxu0
    %v2007 = vadd.f32 %v1874, %v2006
    %v2008 = vpop.f32.mrb[0].mxu0
    %v2009 = vpop.f32.mrb[0].mxu0
    %v2010 = vadd.f32 %v1874, %v2009
    %v2011 = vpop.f32.mrb[0].mxu0
    %2012 = vmatprep.mubr.bf16.mxu0 %v1808
    %2013 = vmatmul.mubr.bf16.gmra.mrb[0].mxu0 %v1807
    %v2014 = vpop.f32.mrb[0].mxu0
    %v2015 = vadd.f32 %v1874, %v2014
    %v2016 = vpop.f32.mrb[0].mxu0
    %v2017 = vpop.f32.mrb[0].mxu0
    %v2018 = vadd.f32 %v1874, %v2017
    %v2019 = vpop.f32.mrb[0].mxu0
    %2020 = vmatprep.mubr.bf16.mxu0 %v1810
    %2021 = vmatmul.mubr.bf16.gmra.mrb[0].mxu0 %v1809
    %v2022 = vpop.f32.mrb[0].mxu0
    %v2023 = vadd.f32 %v1874, %v2022
    %v2024 = vpop.f32.mrb[0].mxu0
    %v2025 = vpop.f32.mrb[0].mxu0
    %v2026 = vadd.f32 %v1874, %v2025
    %v2027 = vpop.f32.mrb[0].mxu0
    %2028 = vmatprep.mubr.bf16.mxu0 %v1812
    %2029 = vmatmul.mubr.bf16.gmra.mrb[0].mxu0 %v1811
    %v2030 = vpop.f32.mrb[0].mxu0
    %v2031 = vadd.f32 %v1874, %v2030
    %v2032 = vpop.f32.mrb[0].mxu0
    %v2033 = vpop.f32.mrb[0].mxu0
    %v2034 = vadd.f32 %v1874, %v2033
    %v2035 = vpop.f32.mrb[0].mxu0
    %2036 = vmatprep.mubr.bf16.mxu0 %v1814
    %2037 = vmatmul.mubr.bf16.gmra.mrb[0].mxu0 %v1813
    %v2038 = vpop.f32.mrb[0].mxu0
    %v2039 = vadd.f32 %v1874, %v2038
    %v2040 = vpop.f32.mrb[0].mxu0
    %v2041 = vpop.f32.mrb[0].mxu0
    %v2042 = vadd.f32 %v1874, %v2041
    %v2043 = vpop.f32.mrb[0].mxu0
    %2044 = vmatprep.mubr.bf16.mxu0 %v1816
    %2045 = vmatmul.mubr.bf16.gmra.mrb[0].mxu0 %v1815
    %v2046 = vpop.f32.mrb[0].mxu0
    %v2047 = vadd.f32 %v1874, %v2046
    %v2048 = vpop.f32.mrb[0].mxu0
    %v2049 = vpop.f32.mrb[0].mxu0
    %v2050 = vadd.f32 %v1874, %v2049
    %v2051 = vpop.f32.mrb[0].mxu0
    %2052 = vmatprep.mubr.bf16.mxu0 %v1818
    %2053 = vmatmul.mubr.bf16.gmra.mrb[0].mxu0 %v1817
    %v2054 = vpop.f32.mrb[0].mxu0
    %v2055 = vadd.f32 %v1874, %v2054
    %v2056 = vpop.f32.mrb[0].mxu0
    %v2057 = vpop.f32.mrb[0].mxu0
    %v2058 = vadd.f32 %v1874, %v2057
    %v2059 = vpop.f32.mrb[0].mxu0
    %2060 = vmatprep.mubr.bf16.mxu0 %v1820
    %2061 = vmatmul.mubr.bf16.gmra.mrb[0].mxu0 %v1819
    %v2062 = vpop.f32.mrb[0].mxu0
    %v2063 = vadd.f32 %v1874, %v2062
    %v2064 = vpop.f32.mrb[0].mxu0
    %v2065 = vpop.f32.mrb[0].mxu0
    %v2066 = vadd.f32 %v1874, %v2065
    %v2067 = vpop.f32.mrb[0].mxu0
    %2068 = vmatprep.mubr.bf16.mxu0 %v1822
    %2069 = vmatmul.mubr.bf16.gmra.mrb[0].mxu0 %v1821
    %v2070 = vpop.f32.mrb[0].mxu0
    %v2071 = vadd.f32 %v1874, %v2070
    %v2072 = vpop.f32.mrb[0].mxu0
    %v2073 = vpop.f32.mrb[0].mxu0
    %v2074 = vadd.f32 %v1874, %v2073
    %v2075 = vpop.f32.mrb[0].mxu0
    %2076 = vmatprep.mubr.bf16.mxu0 %v1824
    %2077 = vmatmul.mubr.bf16.gmra.mrb[0].mxu0 %v1823
    %v2078 = vpop.f32.mrb[0].mxu0
    %v2079 = vadd.f32 %v1874, %v2078
    %v2080 = vpop.f32.mrb[0].mxu0
    %v2081 = vpop.f32.mrb[0].mxu0
    %v2082 = vadd.f32 %v1874, %v2081
    %v2083 = vpop.f32.mrb[0].mxu0
    %2084 = vmatprep.mubr.bf16.mxu0 %v1826
    %2085 = vmatmul.mubr.bf16.gmra.mrb[0].mxu0 %v1825
    %v2086 = vpop.f32.mrb[0].mxu0
    %v2087 = vadd.f32 %v1874, %v2086
    %v2088 = vpop.f32.mrb[0].mxu0
    %v2089 = vpop.f32.mrb[0].mxu0
    %v2090 = vadd.f32 %v1874, %v2089
    %v2091 = vpop.f32.mrb[0].mxu0
    %2092 = vmatprep.mubr.bf16.mxu0 %v1828
    %2093 = vmatmul.mubr.bf16.gmra.mrb[0].mxu0 %v1827
    %v2094 = vpop.f32.mrb[0].mxu0
    %v2095 = vadd.f32 %v1874, %v2094
    %v2096 = vpop.f32.mrb[0].mxu0
    %v2097 = vpop.f32.mrb[0].mxu0
    %v2098 = vadd.f32 %v1874, %v2097
    %v2099 = vpop.f32.mrb[0].mxu0
    %2100 = vmatprep.mubr.bf16.mxu0 %v1830
    %2101 = vmatmul.mubr.bf16.gmra.mrb[0].mxu0 %v1829
    %v2102 = vpop.f32.mrb[0].mxu0
    %v2103 = vadd.f32 %v1874, %v2102
    %v2104 = vpop.f32.mrb[0].mxu0
    %v2105 = vpop.f32.mrb[0].mxu0
    %v2106 = vadd.f32 %v1874, %v2105
    %v2107 = vpop.f32.mrb[0].mxu0
    %2108 = vmatprep.mubr.bf16.mxu0 %v1832
    %2109 = vmatmul.mubr.bf16.gmra.mrb[0].mxu0 %v1831
    %v2110 = vpop.f32.mrb[0].mxu0
    %v2111 = vadd.f32 %v1874, %v2110
    %v2112 = vpop.f32.mrb[0].mxu0
    %v2113 = vpop.f32.mrb[0].mxu0
    %v2114 = vadd.f32 %v1874, %v2113
    %v2115 = vpop.f32.mrb[0].mxu0
    %2116 = vmatprep.mubr.bf16.mxu0 %v1834
    %2117 = vmatmul.mubr.bf16.gmra.mrb[0].mxu0 %v1833
    %v2118 = vpop.f32.mrb[0].mxu0
    %v2119 = vadd.f32 %v1874, %v2118
    %v2120 = vpop.f32.mrb[0].mxu0
    %v2121 = vpop.f32.mrb[0].mxu0
    %v2122 = vadd.f32 %v1874, %v2121
    %v2123 = vpop.f32.mrb[0].mxu0
    %2124 = vmatprep.mubr.bf16.mxu0 %v1836
    %2125 = vmatmul.mubr.bf16.gmra.mrb[0].mxu0 %v1835
    %v2126 = vpop.f32.mrb[0].mxu0
    %v2127 = vadd.f32 %v1874, %v2126
    %v2128 = vpop.f32.mrb[0].mxu0
    %v2129 = vpop.f32.mrb[0].mxu0
    %v2130 = vadd.f32 %v1874, %v2129
    %v2131 = vpop.f32.mrb[0].mxu0
    %2132 = vdwg.mxu0
    %v2133 = vpack.c.bf16 %v2010, %v2007
    %v2134 = vpack.c.bf16 %v2018, %v2015
    %v2135 = vpack.c.bf16 %v2026, %v2023
    %v2136 = vpack.c.bf16 %v2034, %v2031
    %v2137 = vpack.c.bf16 %v2042, %v2039
    %v2138 = vpack.c.bf16 %v2050, %v2047
    %v2139 = vpack.c.bf16 %v2058, %v2055
    %v2140 = vpack.c.bf16 %v2066, %v2063
    %v2141 = vpack.c.bf16 %v2074, %v2071
    %v2142 = vpack.c.bf16 %v2082, %v2079
    %v2143 = vpack.c.bf16 %v2090, %v2087
    %v2144 = vpack.c.bf16 %v2098, %v2095
    %v2145 = vpack.c.bf16 %v2106, %v2103
    %v2146 = vpack.c.bf16 %v2114, %v2111
    %v2147 = vpack.c.bf16 %v2122, %v2119
    %v2148 = vpack.c.bf16 %v2130, %v2127
    %v2165 = vunpack.c.l.b16 %v2133
    %v2166 = vunpack.c.h.b16 %v2133
    %v2167 = vunpack.c.l.b16 %v2134
    %v2168 = vunpack.c.h.b16 %v2134
    %v2169 = vunpack.c.l.b16 %v2135
    %v2170 = vunpack.c.h.b16 %v2135
    %v2171 = vunpack.c.l.b16 %v2136
    %v2172 = vunpack.c.h.b16 %v2136
    %v2173 = vunpack.c.l.b16 %v2137
    %v2174 = vunpack.c.h.b16 %v2137
    %v2175 = vunpack.c.l.b16 %v2138
    %v2176 = vunpack.c.h.b16 %v2138
    %v2177 = vunpack.c.l.b16 %v2139
    %v2178 = vunpack.c.h.b16 %v2139
    %v2179 = vunpack.c.l.b16 %v2140
    %v2180 = vunpack.c.h.b16 %v2140
    %v2181 = vunpack.c.l.b16 %v2141
    %v2182 = vunpack.c.h.b16 %v2141
    %v2183 = vunpack.c.l.b16 %v2142
    %v2184 = vunpack.c.h.b16 %v2142
    %v2185 = vunpack.c.l.b16 %v2143
    %v2186 = vunpack.c.h.b16 %v2143
    %v2187 = vunpack.c.l.b16 %v2144
    %v2188 = vunpack.c.h.b16 %v2144
    %v2189 = vunpack.c.l.b16 %v2145
    %v2190 = vunpack.c.h.b16 %v2145
    %v2191 = vunpack.c.l.b16 %v2146
    %v2192 = vunpack.c.h.b16 %v2146
    %v2193 = vunpack.c.l.b16 %v2147
    %v2194 = vunpack.c.h.b16 %v2147
    %v2195 = vunpack.c.l.b16 %v2148
    %v2196 = vunpack.c.h.b16 %v2148
    %v2197 = vpack.c.b16 %v2165, %v2165
    %v2198 = vpack.c.b16 %v2166, %v2166
    %v2199 = vpack.c.b16 %v2167, %v2167
    %v2200 = vpack.c.b16 %v2168, %v2168
    %v2201 = vpack.c.b16 %v2169, %v2169
    %v2202 = vpack.c.b16 %v2170, %v2170
    %v2203 = vpack.c.b16 %v2171, %v2171
    %v2204 = vpack.c.b16 %v2172, %v2172
    %v2205 = vpack.c.b16 %v2173, %v2173
    %v2206 = vpack.c.b16 %v2174, %v2174
    %v2207 = vpack.c.b16 %v2175, %v2175
    %v2208 = vpack.c.b16 %v2176, %v2176
    %v2209 = vpack.c.b16 %v2177, %v2177
    %v2210 = vpack.c.b16 %v2178, %v2178
    %v2211 = vpack.c.b16 %v2179, %v2179
    %v2212 = vpack.c.b16 %v2180, %v2180
    %v2213 = vpack.c.b16 %v2181, %v2181
    %v2214 = vpack.c.b16 %v2182, %v2182
    %v2215 = vpack.c.b16 %v2183, %v2183
    %v2216 = vpack.c.b16 %v2184, %v2184
    %v2217 = vpack.c.b16 %v2185, %v2185
    %v2218 = vpack.c.b16 %v2186, %v2186
    %v2219 = vpack.c.b16 %v2187, %v2187
    %v2220 = vpack.c.b16 %v2188, %v2188
    %v2221 = vpack.c.b16 %v2189, %v2189
    %v2222 = vpack.c.b16 %v2190, %v2190
    %v2223 = vpack.c.b16 %v2191, %v2191
    %v2224 = vpack.c.b16 %v2192, %v2192
    %v2225 = vpack.c.b16 %v2193, %v2193
    %v2226 = vpack.c.b16 %v2194, %v2194
    %v2227 = vpack.c.b16 %v2195, %v2195
    %v2228 = vpack.c.b16 %v2196, %v2196
    %2261 = vst [vmem:[%s13] sm:$0xf] %v2197
    %2262 = vst [vmem:[%s13 + $0x4] sm:$0xf] %v2198
    %2263 = vst [vmem:[%s13 + $0x8] sm:$0xf] %v2199
    %2264 = vst [vmem:[%s13 + $0xc] sm:$0xf] %v2200
    %2265 = vst [vmem:[%s13 + $0x10] sm:$0xf] %v2201
    %2266 = vst [vmem:[%s13 + $0x14] sm:$0xf] %v2202
    %2267 = vst [vmem:[%s13 + $0x18] sm:$0xf] %v2203
    %2268 = vst [vmem:[%s13 + $0x1c] sm:$0xf] %v2204
    %2269 = vst [vmem:[%s13 + $0x20] sm:$0xf] %v2205
    %2270 = vst [vmem:[%s13 + $0x24] sm:$0xf] %v2206
    %2271 = vst [vmem:[%s13 + $0x28] sm:$0xf] %v2207
    %2272 = vst [vmem:[%s13 + $0x2c] sm:$0xf] %v2208
    %2273 = vst [vmem:[%s13 + $0x30] sm:$0xf] %v2209
    %2274 = vst [vmem:[%s13 + $0x34] sm:$0xf] %v2210
    %2275 = vst [vmem:[%s13 + $0x38] sm:$0xf] %v2211
    %2276 = vst [vmem:[%s13 + $0x3c] sm:$0xf] %v2212
    %2277 = vst [vmem:[%s13 + $0x40] sm:$0xf] %v2213
    %2278 = vst [vmem:[%s13 + $0x44] sm:$0xf] %v2214
    %2279 = vst [vmem:[%s13 + $0x48] sm:$0xf] %v2215
    %2280 = vst [vmem:[%s13 + $0x4c] sm:$0xf] %v2216
    %2281 = vst [vmem:[%s13 + $0x50] sm:$0xf] %v2217
    %2282 = vst [vmem:[%s13 + $0x54] sm:$0xf] %v2218
    %2283 = vst [vmem:[%s13 + $0x58] sm:$0xf] %v2219
    %2284 = vst [vmem:[%s13 + $0x5c] sm:$0xf] %v2220
    %2285 = vst [vmem:[%s13 + $0x60] sm:$0xf] %v2221
    %2286 = vst [vmem:[%s13 + $0x64] sm:$0xf] %v2222
    %2287 = vst [vmem:[%s13 + $0x68] sm:$0xf] %v2223
    %2288 = vst [vmem:[%s13 + $0x6c] sm:$0xf] %v2224
    %2289 = vst [vmem:[%s13 + $0x70] sm:$0xf] %v2225
    %2290 = vst [vmem:[%s13 + $0x74] sm:$0xf] %v2226
    %2291 = vst [vmem:[%s13 + $0x78] sm:$0xf] %v2227
    %2292 = vst [vmem:[%s13 + $0x7c] sm:$0xf] %v2228
    // Predicated region
    $region62: #{_forward_impl.1} parent=1 // pred_check
      _
    $region63: #{_forward_impl.1} parent=1 // pred_check_branch
      %2294 = sbr.rel (0) target = $region65
    $region64: #{_forward_impl.1} parent=1 // pred_region
      _
    $region65: #{_forward_impl.1} parent=1 // pred_fallthru
      _
    // Predicated region
    $region66: #{_forward_impl.1} parent=1 // pred_check
      _
    $region67: #{_forward_impl.1} parent=1 // pred_check_branch
      %2296 = sbr.rel (0) target = $region69
    $region68: #{_forward_impl.1} parent=1 // pred_region
      _
    $region69: #{_forward_impl.1} parent=1 // pred_fallthru
      _
    // Predicated region
    $region70: #{_forward_impl.1} parent=1 // pred_check
      _
    $region71: #{_forward_impl.1} parent=1 // pred_check_branch
      %2298 = sbr.rel (0) target = $region73
    $region72: #{_forward_impl.1} parent=1 // pred_region
      _
    $region73: #{_forward_impl.1} parent=1 // pred_fallthru
      _
    // Predicated region
    $region74: #{_forward_impl.1} parent=1 // pred_check
      _
    $region75: #{_forward_impl.1} parent=1 // pred_check_branch
      %2300 = sbr.rel (0) target = $region77
    $region76: #{_forward_impl.1} parent=1 // pred_region
      _
    $region77: #{_forward_impl.1} parent=1 // pred_fallthru
      _
    %2301 = vsyncpa [#allocation3], 1
    %2302 = vsyncpa [#allocation5], 1

</llo_original>
